<compile_context>
chip_gen: v5e
topology: v5e:2x2
jax: 0.10.0
libtpu: 0.0.40
codegen_flags: <defaults>
</compile_context>

<pallas_src>
import jax
import jax.numpy as jnp
from jax import lax
from jax.experimental import pallas as pl
from jax.experimental.pallas import tpu as pltpu

_BN_EPS = 1e-5
_BN_SCALE = 1.0 / jnp.sqrt(1.0 + _BN_EPS)  # eval BN, default stats (mean=0, var=1, gamma=1, beta=0)


# ----------------------------- backbone (plain JAX) -----------------------------
# TODO(synk): pretrained torchvision resnet18 conv stack + forward-hook have no clean Pallas
# equivalent here; the conv stack stays in plain JAX with deterministic weights and the
# avgpool hook is replaced by returning the pre-pool feature map (pooled inside the kernel).

def _conv(x, w, stride, pad):
    return lax.conv_general_dilated(
        x, w, window_strides=(stride, stride), padding=pad,
        dimension_numbers=("NHWC", "HWIO", "NHWC"))


def _bn(x):
    return x * _BN_SCALE


def _maxpool3x3s2(x):
    return lax.reduce_window(
        x, -jnp.inf, lax.max,
        window_dimensions=(1, 3, 3, 1),
        window_strides=(1, 2, 2, 1),
        padding=((0, 0), (1, 1), (1, 1), (0, 0)))


def _basic_block(x, blk, stride):
    out = jax.nn.relu(_bn(_conv(x, blk["conv1"], stride, ((1, 1), (1, 1)))))
    out = _bn(_conv(out, blk["conv2"], 1, ((1, 1), (1, 1))))
    identity = x
    if "down" in blk:
        identity = _bn(_conv(x, blk["down"], stride, ((0, 0), (0, 0))))
    return jax.nn.relu(out + identity)


def resnet18_features(x_nchw, p):
    x = jnp.transpose(x_nchw, (0, 2, 3, 1))  # NCHW -> NHWC
    x = jax.nn.relu(_bn(_conv(x, p["conv1"], 2, ((3, 3), (3, 3)))))
    x = _maxpool3x3s2(x)
    for si, blocks in enumerate(p["layers"]):
        for bi, blk in enumerate(blocks):
            stride = 2 if (si > 0 and bi == 0) else 1
            x = _basic_block(x, blk, stride)
    B, H, W, C = x.shape
    # bf16 pre-pool feature map: halves the kernel's HBM read (pool accumulates in f32).
    return x.reshape(B, H * W, C).astype(jnp.bfloat16)


# ----------------------------- Pallas kernel (hot path) -----------------------------

def _head_kernel(feat_ref, w1_ref, b1_ref, w2_ref, b2_ref, w3_ref, b3_ref,
                 a1_ref, a2_ref, out_ref, acc_ref):
    hw_i = pl.program_id(1)

    @pl.when(hw_i == 0)
    def _():
        acc_ref[...] = jnp.zeros_like(acc_ref)

    # Streamed global-sum pool: upcast the bf16 tile to f32, accumulate in f32 scratch.
    acc_ref[...] += jnp.sum(feat_ref[...].astype(jnp.float32), axis=1)

    @pl.when(hw_i == pl.num_programs(1) - 1)
    def _():
        emb = acc_ref[...]                                   # (bt, 512); 1/HW folded into w1
        h = jnp.dot(emb, w1_ref[...], preferred_element_type=jnp.float32) + b1_ref[...]
        h = jnp.where(h >= 0, h, a1_ref[...] * h)            # PReLU (single shared alpha)
        h = jnp.dot(h, w2_ref[...], preferred_element_type=jnp.float32) + b2_ref[...]
        h = jnp.where(h >= 0, h, a2_ref[...] * h)
        h = jnp.dot(h, w3_ref[...], preferred_element_type=jnp.float32) + b3_ref[...]
        # L2 normalize. Padded columns (30..127) are exactly zero, so they don't
        # contribute to sumsq. rsqrt -> EUP; tiny eps avoids 0/0.
        sumsq = jnp.sum(h * h, axis=1, keepdims=True)
        out_ref[...] = h * lax.rsqrt(sumsq + 1e-12)


def _round_up(x, m):
    return ((x + m - 1) // m) * m


def _pick_hw_tiling(hw, target=256):
    """Return (hw_tile, hw_padded): hw_tile a multiple of 8, block <= ~2 MB bf16."""
    hw8 = _round_up(hw, 8)
    if hw8 <= target:
        return hw8, hw8
    for t in range(target, 7, -8):
        if hw8 % t == 0:
            return t, hw8
    return target, _round_up(hw, target)


def fc_head_l2(feat, p):
    B, HW, C = feat.shape
    assert C == 512

    # Host-side parameter prep -------------------------------------------------
    w1 = p["w1"] * (1.0 / float(HW))          # fold the 1/HW average into w1
    b1 = p["b1"].reshape(1, -1)
    w2 = p["w2"]
    b2 = p["b2"].reshape(1, -1)
    # Pad the 30-wide final layer to a lane-dense 128 columns (sliced back below).
    w3 = jnp.zeros((256, 128), jnp.float32).at[:, :30].set(p["w3"])
    b3 = jnp.zeros((1, 128), jnp.float32).at[:, :30].set(p["b3"].reshape(1, -1))
    # Broadcast the single PReLU parameters across a lane-dense (1, 256) row.
    a1 = jnp.broadcast_to(p["a1"].reshape(1, 1), (1, 256)).astype(jnp.float32)
    a2 = jnp.broadcast_to(p["a2"].reshape(1, 1), (1, 256)).astype(jnp.float32)

    # Tiling --------------------------------------------------------------------
    bt = 8                                    # batch tile (f32 sublane multiple)
    b_pad = _round_up(B, bt)
    hw_tile, hw_pad = _pick_hw_tiling(HW)
    if (b_pad, hw_pad) != (B, HW):
        # Zero padding leaves the pooled *sum* unchanged; 1/HW uses the true HW.
        feat = jnp.pad(feat, ((0, b_pad - B), (0, hw_pad - HW), (0, 0)))

    grid = (b_pad // bt, hw_pad // hw_tile)

    out = pl.pallas_call(
        _head_kernel,
        out_shape=jax.ShapeDtypeStruct((b_pad, 128), jnp.float32),
        grid_spec=pltpu.PrefetchScalarGridSpec(
            num_scalar_prefetch=0,
            grid=grid,
            in_specs=[
                pl.BlockSpec((bt, hw_tile, 512), lambda b, h: (b, h, 0)),  # feat (streamed)
                pl.BlockSpec((512, 256), lambda b, h: (0, 0)),             # w1 (resident)
                pl.BlockSpec((1, 256),   lambda b, h: (0, 0)),             # b1
                pl.BlockSpec((256, 256), lambda b, h: (0, 0)),             # w2
                pl.BlockSpec((1, 256),   lambda b, h: (0, 0)),             # b2
                pl.BlockSpec((256, 128), lambda b, h: (0, 0)),             # w3 (padded)
                pl.BlockSpec((1, 128),   lambda b, h: (0, 0)),             # b3 (padded)
                pl.BlockSpec((1, 256),   lambda b, h: (0, 0)),             # PReLU a1
                pl.BlockSpec((1, 256),   lambda b, h: (0, 0)),             # PReLU a2
            ],
            out_specs=pl.BlockSpec((bt, 128), lambda b, h: (b, 0)),
            scratch_shapes=[pltpu.VMEM((bt, 512), jnp.float32)],           # pooled-sum acc
        ),
        compiler_params=pltpu.CompilerParams(
            dimension_semantics=("parallel", "arbitrary"),
            vmem_limit_bytes=32 * 1024 * 1024,
        ),
    )(feat, w1, b1, w2, b2, w3, b3, a1, a2)

    return out[:B, :30]


def embedding_net_l2(x_nchw, params):
    feat = resnet18_features(x_nchw, params)
    return fc_head_l2(feat, params)


# ----------------------------- deterministic params -----------------------------

def _he(key, shape):  # HWIO
    fan_in = shape[0] * shape[1] * shape[2]
    return jax.random.normal(key, shape, jnp.float32) * jnp.sqrt(2.0 / fan_in)


def _linear(key, fan_in, fan_out):
    k1, k2 = jax.random.split(key)
    bound = 1.0 / jnp.sqrt(float(fan_in))
    w = jax.random.uniform(k1, (fan_in, fan_out), jnp.float32, -bound, bound)
    b = jax.random.uniform(k2, (fan_out,), jnp.float32, -bound, bound)
    return w, b


def init_params(key):
    keys = iter(jax.random.split(key, 64))
    p = {"conv1": _he(next(keys), (7, 7, 3, 64)), "layers": []}
    stages = [(64, 64, 1), (64, 128, 2), (128, 256, 2), (256, 512, 2)]
    for cin, cout, stride in stages:
        blocks = []
        for bi in range(2):
            s = stride if bi == 0 else 1
            ci = cin if bi == 0 else cout
            blk = {"conv1": _he(next(keys), (3, 3, ci, cout)),
                   "conv2": _he(next(keys), (3, 3, cout, cout))}
            if s != 1 or ci != cout:
                blk["down"] = _he(next(keys), (1, 1, ci, cout))
            blocks.append(blk)
        p["layers"].append(blocks)
    # fc head
    p["w1"], p["b1"] = _linear(next(keys), 512, 256)
    p["w2"], p["b2"] = _linear(next(keys), 256, 256)
    p["w3"], p["b3"] = _linear(next(keys), 256, 30)
    # nn.PReLU() defaults: single parameter, init 0.25
    p["a1"] = jnp.full((1,), 0.25, jnp.float32)
    p["a2"] = jnp.full((1,), 0.25, jnp.float32)
    return p


if __name__ == "__main__":
    key = jax.random.PRNGKey(0)
    pkey, xkey = jax.random.split(key)
    params = init_params(pkey)

    # small NCHW input (PyTorch convention): batch=2, 3 channels, 64x64 spatial
    x = jax.random.normal(xkey, (2, 3, 64, 64), jnp.float32)

    fwd = jax.jit(embedding_net_l2)
    out = jax.block_until_ready(fwd(x, params))

    assert out.shape == (2, 30) and out.dtype == jnp.float32
    # L2 norm of each row should be ~1
    norms = jnp.sqrt(jnp.sum(out * out, axis=1))
    assert jnp.allclose(norms, 1.0, atol=1e-4)
    print("KERNEL_OK")
</pallas_src>

<mosaic_0001>
module attributes {stable_mosaic.version = 11 : i64} {
  func.func @_head_kernel(%arg0: i32, %arg1: i32, %arg2: memref<8x8x512xbf16, #tpu.memory_space<vmem>>, %arg3: memref<512x256xf32, #tpu.memory_space<vmem>>, %arg4: memref<1x256xf32, #tpu.memory_space<vmem>>, %arg5: memref<256x256xf32, #tpu.memory_space<vmem>>, %arg6: memref<1x256xf32, #tpu.memory_space<vmem>>, %arg7: memref<256x128xf32, #tpu.memory_space<vmem>>, %arg8: memref<1x128xf32, #tpu.memory_space<vmem>>, %arg9: memref<1x256xf32, #tpu.memory_space<vmem>>, %arg10: memref<1x256xf32, #tpu.memory_space<vmem>>, %arg11: memref<8x128xf32, #tpu.memory_space<vmem>>, %arg12: memref<8x512xf32, #tpu.memory_space<vmem>>) attributes {dimension_semantics = [#tpu.dimension_semantics<parallel>, #tpu.dimension_semantics<arbitrary>], iteration_bounds = array<i64: 1, 1>, scalar_prefetch = 0 : i64, scratch_operands = 1 : i64, tpu.core_type = #tpu.core_type<tc>, window_params = [{transform_indices = @transform_0, window_bounds = array<i64: 8, 8, 512>}, {pipeline_mode = #tpu.pipeline_mode<synchronous>, transform_indices = @transform_1, window_bounds = array<i64: 512, 256>}, {pipeline_mode = #tpu.pipeline_mode<synchronous>, transform_indices = @transform_2, window_bounds = array<i64: 1, 256>}, {pipeline_mode = #tpu.pipeline_mode<synchronous>, transform_indices = @transform_3, window_bounds = array<i64: 256, 256>}, {pipeline_mode = #tpu.pipeline_mode<synchronous>, transform_indices = @transform_4, window_bounds = array<i64: 1, 256>}, {pipeline_mode = #tpu.pipeline_mode<synchronous>, transform_indices = @transform_5, window_bounds = array<i64: 256, 128>}, {pipeline_mode = #tpu.pipeline_mode<synchronous>, transform_indices = @transform_6, window_bounds = array<i64: 1, 128>}, {pipeline_mode = #tpu.pipeline_mode<synchronous>, transform_indices = @transform_7, window_bounds = array<i64: 1, 256>}, {pipeline_mode = #tpu.pipeline_mode<synchronous>, transform_indices = @transform_8, window_bounds = array<i64: 1, 256>}, {transform_indices = @transform_9, window_bounds = array<i64: 8, 128>}]} {
    %c0_i32 = arith.constant 0 : i32
    %0 = arith.cmpi eq, %arg1, %c0_i32 : i32
    %1 = arith.extui %0 : i1 to i32
    %c0_i32_0 = arith.constant 0 : i32
    %2 = arith.cmpi ne, %1, %c0_i32_0 : i32
    scf.if %2 {
      %cst_9 = arith.constant 0.000000e+00 : f32
      %12 = vector.broadcast %cst_9 : f32 to vector<8x512xf32>
      %c0_10 = arith.constant 0 : index
      %c0_11 = arith.constant 0 : index
      %13 = vector.load %arg12[%c0_10, %c0_11] : memref<8x512xf32, #tpu.memory_space<vmem>>, vector<8x512xf32>
      tpu.vector_store %arg12[%c0_10, %c0_11], %12 {strides = array<i32>} : memref<8x512xf32, #tpu.memory_space<vmem>>, vector<8x512xf32>,
    } else {
    }
    %c0 = arith.constant 0 : index
    %c0_1 = arith.constant 0 : index
    %3 = vector.load %arg12[%c0, %c0_1] : memref<8x512xf32, #tpu.memory_space<vmem>>, vector<8x512xf32>
    %c0_2 = arith.constant 0 : index
    %c0_3 = arith.constant 0 : index
    %c0_4 = arith.constant 0 : index
    %4 = vector.load %arg2[%c0_2, %c0_3, %c0_4] : memref<8x8x512xbf16, #tpu.memory_space<vmem>>, vector<8x8x512xbf16>
    %5 = arith.extf %4 : vector<8x8x512xbf16> to vector<8x8x512xf32>
    %cst = arith.constant dense<0.000000e+00> : vector<8x512xf32>
    %6 = vector.multi_reduction <add>, %5, %cst [1] : vector<8x8x512xf32> to vector<8x512xf32>
    %7 = arith.addf %3, %6 : vector<8x512xf32>
    %c0_5 = arith.constant 0 : index
    %c0_6 = arith.constant 0 : index
    %8 = vector.load %arg12[%c0_5, %c0_6] : memref<8x512xf32, #tpu.memory_space<vmem>>, vector<8x512xf32>
    tpu.vector_store %arg12[%c0_5, %c0_6], %7 {strides = array<i32>} : memref<8x512xf32, #tpu.memory_space<vmem>>, vector<8x512xf32>,
    %c0_i32_7 = arith.constant 0 : i32
    %9 = arith.cmpi eq, %arg1, %c0_i32_7 : i32
    %10 = arith.extui %9 : i1 to i32
    %c0_i32_8 = arith.constant 0 : i32
    %11 = arith.cmpi ne, %10, %c0_i32_8 : i32
    scf.if %11 {
      %c0_9 = arith.constant 0 : index
      %c0_10 = arith.constant 0 : index
      %12 = vector.load %arg12[%c0_9, %c0_10] : memref<8x512xf32, #tpu.memory_space<vmem>>, vector<8x512xf32>
      %c0_11 = arith.constant 0 : index
      %c0_12 = arith.constant 0 : index
      %13 = vector.load %arg3[%c0_11, %c0_12] : memref<512x256xf32, #tpu.memory_space<vmem>>, vector<512x256xf32>
      %cst_13 = arith.constant dense<0.000000e+00> : vector<8x256xf32>
      %14 = tpu.matmul %12, %13, %cst_13 {dimension_numbers = #tpu.dot_dimension_numbers<[1], [0], [0], [1], [0, 0, 1, 1], [], []>} : vector<8x512xf32>, vector<512x256xf32>, vector<8x256xf32> -> vector<8x256xf32>
      %c0_14 = arith.constant 0 : index
      %c0_15 = arith.constant 0 : index
      %15 = vector.load %arg4[%c0_14, %c0_15] : memref<1x256xf32, #tpu.memory_space<vmem>>, vector<1x256xf32>
      %16 = vector.broadcast %15 : vector<1x256xf32> to vector<8x256xf32>
      %17 = arith.addf %14, %16 : vector<8x256xf32>
      %cst_16 = arith.constant 0.000000e+00 : f32
      %18 = vector.broadcast %cst_16 : f32 to vector<8x256xf32>
      %19 = arith.cmpf oge, %17, %18 : vector<8x256xf32>
      %c0_17 = arith.constant 0 : index
      %c0_18 = arith.constant 0 : index
      %20 = vector.load %arg9[%c0_17, %c0_18] : memref<1x256xf32, #tpu.memory_space<vmem>>, vector<1x256xf32>
      %21 = vector.broadcast %20 : vector<1x256xf32> to vector<8x256xf32>
      %22 = arith.mulf %21, %17 : vector<8x256xf32>
      %23 = arith.select %19, %17, %22 : vector<8x256xi1>, vector<8x256xf32>
      %c0_19 = arith.constant 0 : index
      %c0_20 = arith.constant 0 : index
      %24 = vector.load %arg5[%c0_19, %c0_20] : memref<256x256xf32, #tpu.memory_space<vmem>>, vector<256x256xf32>
      %cst_21 = arith.constant dense<0.000000e+00> : vector<8x256xf32>
      %25 = tpu.matmul %23, %24, %cst_21 {dimension_numbers = #tpu.dot_dimension_numbers<[1], [0], [0], [1], [0, 0, 1, 1], [], []>} : vector<8x256xf32>, vector<256x256xf32>, vector<8x256xf32> -> vector<8x256xf32>
      %c0_22 = arith.constant 0 : index
      %c0_23 = arith.constant 0 : index
      %26 = vector.load %arg6[%c0_22, %c0_23] : memref<1x256xf32, #tpu.memory_space<vmem>>, vector<1x256xf32>
      %27 = vector.broadcast %26 : vector<1x256xf32> to vector<8x256xf32>
      %28 = arith.addf %25, %27 : vector<8x256xf32>
      %cst_24 = arith.constant 0.000000e+00 : f32
      %29 = vector.broadcast %cst_24 : f32 to vector<8x256xf32>
      %30 = arith.cmpf oge, %28, %29 : vector<8x256xf32>
      %c0_25 = arith.constant 0 : index
      %c0_26 = arith.constant 0 : index
      %31 = vector.load %arg10[%c0_25, %c0_26] : memref<1x256xf32, #tpu.memory_space<vmem>>, vector<1x256xf32>
      %32 = vector.broadcast %31 : vector<1x256xf32> to vector<8x256xf32>
      %33 = arith.mulf %32, %28 : vector<8x256xf32>
      %34 = arith.select %30, %28, %33 : vector<8x256xi1>, vector<8x256xf32>
      %c0_27 = arith.constant 0 : index
      %c0_28 = arith.constant 0 : index
      %35 = vector.load %arg7[%c0_27, %c0_28] : memref<256x128xf32, #tpu.memory_space<vmem>>, vector<256x128xf32>
      %cst_29 = arith.constant dense<0.000000e+00> : vector<8x128xf32>
      %36 = tpu.matmul %34, %35, %cst_29 {dimension_numbers = #tpu.dot_dimension_numbers<[1], [0], [0], [1], [0, 0, 1, 1], [], []>} : vector<8x256xf32>, vector<256x128xf32>, vector<8x128xf32> -> vector<8x128xf32>
      %c0_30 = arith.constant 0 : index
      %c0_31 = arith.constant 0 : index
      %37 = vector.load %arg8[%c0_30, %c0_31] : memref<1x128xf32, #tpu.memory_space<vmem>>, vector<1x128xf32>
      %38 = vector.broadcast %37 : vector<1x128xf32> to vector<8x128xf32>
      %39 = arith.addf %36, %38 : vector<8x128xf32>
      %40 = arith.mulf %39, %39 : vector<8x128xf32>
      %cst_32 = arith.constant dense<0.000000e+00> : vector<8xf32>
      %41 = vector.multi_reduction <add>, %40, %cst_32 [1] : vector<8x128xf32> to vector<8xf32>
      %42 = vector.shape_cast %41 : vector<8xf32> to vector<8x1xf32>
      %cst_33 = arith.constant 9.99999996E-13 : f32
      %43 = vector.broadcast %cst_33 : f32 to vector<8x1xf32>
      %44 = arith.addf %42, %43 : vector<8x1xf32>
      %45 = math.rsqrt %44 : vector<8x1xf32>
      %46 = vector.broadcast %45 : vector<8x1xf32> to vector<8x128xf32>
      %47 = arith.mulf %39, %46 : vector<8x128xf32>
      %c0_34 = arith.constant 0 : index
      %c0_35 = arith.constant 0 : index
      %48 = vector.load %arg11[%c0_34, %c0_35] : memref<8x128xf32, #tpu.memory_space<vmem>>, vector<8x128xf32>
      tpu.vector_store %arg11[%c0_34, %c0_35], %47 {strides = array<i32>} : memref<8x128xf32, #tpu.memory_space<vmem>>, vector<8x128xf32>,
    } else {
    }
    return
  }
  func.func @transform_0(%arg0: i32, %arg1: i32) -> (i32, i32, i32) {
    %c0_i32 = arith.constant 0 : i32
    %c0_i32_0 = arith.constant 0 : i32
    return %arg0, %arg1, %c0_i32 : i32, i32, i32
  }
  func.func @transform_1(%arg0: i32, %arg1: i32) -> (i32, i32) {
    %c0_i32 = arith.constant 0 : i32
    %c0_i32_0 = arith.constant 0 : i32
    %c0_i32_1 = arith.constant 0 : i32
    return %c0_i32, %c0_i32_0 : i32, i32
  }
  func.func @transform_2(%arg0: i32, %arg1: i32) -> (i32, i32) {
    %c0_i32 = arith.constant 0 : i32
    %c0_i32_0 = arith.constant 0 : i32
    %c0_i32_1 = arith.constant 0 : i32
    return %c0_i32, %c0_i32_0 : i32, i32
  }
  func.func @transform_3(%arg0: i32, %arg1: i32) -> (i32, i32) {
    %c0_i32 = arith.constant 0 : i32
    %c0_i32_0 = arith.constant 0 : i32
    %c0_i32_1 = arith.constant 0 : i32
    return %c0_i32, %c0_i32_0 : i32, i32
  }
  func.func @transform_4(%arg0: i32, %arg1: i32) -> (i32, i32) {
    %c0_i32 = arith.constant 0 : i32
    %c0_i32_0 = arith.constant 0 : i32
    %c0_i32_1 = arith.constant 0 : i32
    return %c0_i32, %c0_i32_0 : i32, i32
  }
  func.func @transform_5(%arg0: i32, %arg1: i32) -> (i32, i32) {
    %c0_i32 = arith.constant 0 : i32
    %c0_i32_0 = arith.constant 0 : i32
    %c0_i32_1 = arith.constant 0 : i32
    return %c0_i32, %c0_i32_0 : i32, i32
  }
  func.func @transform_6(%arg0: i32, %arg1: i32) -> (i32, i32) {
    %c0_i32 = arith.constant 0 : i32
    %c0_i32_0 = arith.constant 0 : i32
    %c0_i32_1 = arith.constant 0 : i32
    return %c0_i32, %c0_i32_0 : i32, i32
  }
  func.func @transform_7(%arg0: i32, %arg1: i32) -> (i32, i32) {
    %c0_i32 = arith.constant 0 : i32
    %c0_i32_0 = arith.constant 0 : i32
    %c0_i32_1 = arith.constant 0 : i32
    return %c0_i32, %c0_i32_0 : i32, i32
  }
  func.func @transform_8(%arg0: i32, %arg1: i32) -> (i32, i32) {
    %c0_i32 = arith.constant 0 : i32
    %c0_i32_0 = arith.constant 0 : i32
    %c0_i32_1 = arith.constant 0 : i32
    return %c0_i32, %c0_i32_0 : i32, i32
  }
  func.func @transform_9(%arg0: i32, %arg1: i32) -> (i32, i32) {
    %c0_i32 = arith.constant 0 : i32
    %c0_i32_0 = arith.constant 0 : i32
    return %arg0, %c0_i32 : i32, i32
  }
}

</mosaic_0001>

<llo_original>
// kernel: reverse
$region0: #{reverse}
  #allocation0 [shape = 's32[1]{0}', space=sflag, size = 0x4, scoped, tag = 'scoped memory for reverse']
  %s0 = inlined_call_operand.vmem [shape: f32[3,3,512,512], index: 0, kind: input, shape index: {}]
  %s1 = inlined_call_operand.vmem [shape: bf16[3,3,512,512], index: 1, kind: output, shape index: {}]
  loop: start=0, step=1, limit=28
  $region2: #{reverse} parent=0 // loop_pre_header
    _
  $region3: #{reverse} parent=0 // loop_header
    %s3 = sphi 0, %s7
    %p4 = scmp.ge.s32.totalorder %s3, 28
    %s18 = sphi 0, %s76
    %s19 = sphi 0, %s72
    %s20 = sphi 0, %s68
    %s21 = sphi 0, %s64
    %s22 = sphi 0, %s18
    %s23 = sphi 0, %s19
    %s24 = sphi 0, %s20
    %s25 = sphi 0, %s21
    %s26 = sphi 0, %s22
    %s27 = sphi 0, %s23
    %s28 = sphi 0, %s24
    %s29 = sphi 0, %s25
    %s30 = sphi 0, %s26
    %s31 = sphi 0, %s27
    %s32 = sphi 0, %s28
    %s33 = sphi 0, %s29
    %s34 = sphi 0, %s30
    %s35 = sphi 0, %s31
    %s36 = sphi 0, %s32
    %s37 = sphi 0, %s33
    %s38 = sphi 0, %s34
    %s39 = sphi 0, %s35
    %s40 = sphi 0, %s36
    %s41 = sphi 0, %s37
    %s42 = sphi 0, %s38
    %s43 = sphi 0, %s39
    %s44 = sphi 0, %s40
    %s45 = sphi 0, %s41
    %s46 = sphi 0, %s42
    %s47 = sphi 0, %s43
    %s48 = sphi 0, %s44
    %s49 = sphi 0, %s45
    %s50 = sphi 0, %s46
    %s51 = sphi 0, %s47
    %s52 = sphi 0, %s48
    %s53 = sphi 0, %s49
    %s54 = sphi 0, %s50
    %s55 = sphi 0, %s51
    %s56 = sphi 0, %s52
    %s57 = sphi 0, %s53
    %s58 = sphi 0, %s54
    %s59 = sphi 0, %s55
    %s60 = sphi 0, %s56
    %s61 = sphi 0, %s57
  $region4: #{reverse} parent=0 // loop_header_branch
    %6 = sbr.rel (%p4) target = $region8
  $region5: #{reverse} parent=0 // loop_body
    %s8 = ssub.s32 %s3, 1
    %s9 = ssub.s32 %s3, 2
    %s10 = ssub.s32 %s3, 3
    %s11 = ssub.s32 %s3, 4
    %s12 = ssub.s32 %s3, 5
    %s13 = ssub.s32 %s3, 6
    %s14 = ssub.s32 %s3, 7
    %s15 = ssub.s32 %s3, 8
    %s16 = ssub.s32 %s3, 9
    %s17 = ssub.s32 %s3, 10
    %s62 = sadd.s32 1, %s21
    %p63 = scmp.ge.s32.totalorder %s62, 1
    %s64 = scalar_select %p63, 0, %s62
    %s65 = sadd.s32 1, %s20
    %s66 = scalar_select %p63, %s65, %s20
    %p67 = scmp.ge.s32.totalorder %s66, 2
    %s68 = scalar_select %p67, 0, %s66
    %s69 = sadd.s32 1, %s19
    %s70 = scalar_select %p67, %s69, %s19
    %p71 = scmp.ge.s32.totalorder %s70, 3
    %s72 = scalar_select %p71, 0, %s70
    %s73 = sadd.s32 1, %s18
    %s74 = scalar_select %p71, %s73, %s18
    %p75 = scmp.ge.s32.totalorder %s74, 3
    %s76 = scalar_select %p75, 0, %s74
    %p77 = scmp.le.s32.totalorder 5, %s3
    %p78 = scmp.lt.s32.totalorder %s3, 23
    %p79 = pnand %p77, %p78
    %p80 = pneg %p79
    // Predicated region
    $region9: #{reverse} parent=5 // pred_check
      _
    $region10: #{reverse} parent=5 // pred_check_branch
      %82 = sbr.rel (%p79) target = $region12
    $region11: #{reverse} parent=5 // pred_region
      %s83 = ssub.s32 %s3, 5
    $region12: #{reverse} parent=5 // pred_fallthru
      _
    %p84 = scmp.lt.s32.totalorder %s3, 18
    // Predicated region
    $region13: #{reverse} parent=5 // pred_check
      %p85 = pneg %p84
    $region14: #{reverse} parent=5 // pred_check_branch
      %87 = sbr.rel (%p85) target = $region16
    $region15: #{reverse} parent=5 // pred_region
      %s88 = ssub.s32 2, %s18
      %s89 = ssub.s32 2, %s19
      %s90 = smul.u32 32, %s20
      %s91 = smul.u32 4, %s21
      %p92 = scmp.lt.s32.totalorder %s88, 2
      %s93 = scalar_select %p92, %s88, 2
      %p94 = scmp.lt.s32.totalorder %s89, 2
      %s95 = scalar_select %p94, %s89, 2
      %p96 = scmp.lt.s32.totalorder %s90, 63
      %s97 = scalar_select %p96, %s90, 63
      %p98 = scmp.lt.s32.totalorder %s91, 3
      %s99 = scalar_select %p98, %s91, 3
      %s100 = smul.addr %s97, 4
      %s101 = sadd.s32 %s99, %s100
      %s102 = smul.addr %s95, 256
      %s103 = sadd.s32 %s101, %s102
      %s104 = smul.addr %s93, 768
      %s105 = sadd.s32 %s103, %s104
      %s106 = smul.addr %s105, 8
      %s107 = scalar_lea.vmem %s0, %s106
      %s108 = ssub.s32 2, %s18
      %s109 = ssub.s32 2, %s19
      %s110 = smul.u32 32, %s20
      %s111 = smul.u32 4, %s21
    $region16: #{reverse} parent=5 // pred_fallthru
      _
    %p112 = scmp.le.s32.totalorder 5, %s3
    %p113 = scmp.lt.s32.totalorder %s3, 23
    %p114 = pnand %p112, %p113
    %p115 = pneg %p114
    // Predicated region
    $region17: #{reverse} parent=5 // pred_check
      _
    $region18: #{reverse} parent=5 // pred_check_branch
      %117 = sbr.rel (%p114) target = $region20
    $region19: #{reverse} parent=5 // pred_region
      %s118 = ssub.s32 %s3, 5
      %s119 = ssub.s32 2, %s38
      %s120 = ssub.s32 2, %s39
      %s121 = smul.u32 32, %s40
      %s122 = smul.u32 4, %s41
      %p123 = scmp.lt.s32.totalorder %s119, 2
      %s124 = scalar_select %p123, %s119, 2
      %p125 = scmp.lt.s32.totalorder %s120, 2
      %s126 = scalar_select %p125, %s120, 2
      %p127 = scmp.lt.s32.totalorder %s121, 63
      %s128 = scalar_select %p127, %s121, 63
      %p129 = scmp.lt.s32.totalorder %s122, 3
      %s130 = scalar_select %p129, %s122, 3
      %s131 = smul.addr %s128, 4
      %s132 = sadd.s32 %s130, %s131
      %s133 = smul.addr %s126, 256
      %s134 = sadd.s32 %s132, %s133
      %s135 = smul.addr %s124, 768
      %s136 = sadd.s32 %s134, %s135
      %s137 = smul.addr %s136, 8
      %s138 = scalar_lea.vmem %s0, %s137
      %s139 = smul.u32 32, %s40
      %s140 = smul.u32 4, %s41
      %p141 = scmp.lt.s32.totalorder %s38, 2
      %s142 = scalar_select %p141, %s38, 2
      %p143 = scmp.lt.s32.totalorder %s39, 2
      %s144 = scalar_select %p143, %s39, 2
      %p145 = scmp.lt.s32.totalorder %s139, 63
      %s146 = scalar_select %p145, %s139, 63
      %p147 = scmp.lt.s32.totalorder %s140, 3
      %s148 = scalar_select %p147, %s140, 3
      %s149 = smul.addr %s146, 4
      %s150 = sadd.s32 %s148, %s149
      %s151 = smul.addr %s144, 256
      %s152 = sadd.s32 %s150, %s151
      %s153 = smul.addr %s142, 768
      %s154 = sadd.s32 %s152, %s153
      %s155 = smul.addr %s154, 4
      %s156 = scalar_lea.vmem %s1, %s155
      %s157 = smul.u32 32, %s40
      %s158 = smul.u32 4, %s41
      %s159 = ssub.s32 2, %s38
      %s160 = ssub.s32 2, %s39
      %s161 = smul.u32 32, %s40
      %s162 = smul.u32 4, %s41
      %p163 = scmp.lt.s32.totalorder %s159, 2
      %s164 = scalar_select %p163, %s159, 2
      %p165 = scmp.lt.s32.totalorder %s160, 2
      %s166 = scalar_select %p165, %s160, 2
      %p167 = scmp.lt.s32.totalorder %s161, 63
      %s168 = scalar_select %p167, %s161, 63
      %p169 = scmp.lt.s32.totalorder %s162, 3
      %s170 = scalar_select %p169, %s162, 3
      %s171 = smul.addr %s168, 4
      %s172 = sadd.s32 %s170, %s171
      %s173 = smul.addr %s166, 256
      %s174 = sadd.s32 %s172, %s173
      %s175 = smul.addr %s164, 768
      %s176 = sadd.s32 %s174, %s175
      %s177 = smul.addr %s176, 8
      %s178 = scalar_lea.vmem %s0, %s177
      %s179 = ssub.s32 2, %s38
      %s180 = ssub.s32 2, %s39
      %s181 = smul.u32 32, %s40
      %s182 = smul.u32 4, %s41
      %s183 = smul.u32 32, %s40
      %s184 = smul.u32 4, %s41
      %p185 = scmp.lt.s32.totalorder %s38, 2
      %s186 = scalar_select %p185, %s38, 2
      %p187 = scmp.lt.s32.totalorder %s39, 2
      %s188 = scalar_select %p187, %s39, 2
      %p189 = scmp.lt.s32.totalorder %s183, 63
      %s190 = scalar_select %p189, %s183, 63
      %p191 = scmp.lt.s32.totalorder %s184, 3
      %s192 = scalar_select %p191, %s184, 3
      %s193 = smul.addr %s190, 4
      %s194 = sadd.s32 %s192, %s193
      %s195 = smul.addr %s188, 256
      %s196 = sadd.s32 %s194, %s195
      %s197 = smul.addr %s186, 768
      %s198 = sadd.s32 %s196, %s197
      %s199 = smul.addr %s198, 4
      %s200 = scalar_lea.vmem %s1, %s199
      %s201 = smul.u32 32, %s40
      %s202 = smul.u32 4, %s41
      %v203 = vld [vmem:[%s178] sm:$0xff]
      %s204 = scalar_lea.vmem %s178, 32
      %v205 = vld [vmem:[%s204] sm:$0xff]
      %s206 = scalar_lea.vmem %s200, 16
      %s207 = scalar_lea.vmem %s178, 64
      %v208 = vld [vmem:[%s207] sm:$0xff]
      %s209 = scalar_lea.vmem %s200, 32
      %s210 = scalar_lea.vmem %s178, 96
      %v211 = vld [vmem:[%s210] sm:$0xff]
      %s212 = scalar_lea.vmem %s200, 48
      %s213 = scalar_lea.vmem %s178, 128
      %v214 = vld [vmem:[%s213] sm:$0xff]
      %s215 = scalar_lea.vmem %s200, 64
      %s216 = scalar_lea.vmem %s178, 160
      %v217 = vld [vmem:[%s216] sm:$0xff]
      %s218 = scalar_lea.vmem %s200, 80
      %s219 = scalar_lea.vmem %s178, 192
      %v220 = vld [vmem:[%s219] sm:$0xff]
      %s221 = scalar_lea.vmem %s200, 96
      %s222 = scalar_lea.vmem %s178, 224
      %v223 = vld [vmem:[%s222] sm:$0xff]
      %s224 = scalar_lea.vmem %s200, 112
      %s225 = scalar_lea.vmem %s178, 256
      %v226 = vld [vmem:[%s225] sm:$0xff]
      %s227 = scalar_lea.vmem %s200, 128
      %s228 = scalar_lea.vmem %s178, 288
      %v229 = vld [vmem:[%s228] sm:$0xff]
      %s230 = scalar_lea.vmem %s200, 144
      %s231 = scalar_lea.vmem %s178, 320
      %v232 = vld [vmem:[%s231] sm:$0xff]
      %s233 = scalar_lea.vmem %s200, 160
      %s234 = scalar_lea.vmem %s178, 352
      %v235 = vld [vmem:[%s234] sm:$0xff]
      %s236 = scalar_lea.vmem %s200, 176
      %s237 = scalar_lea.vmem %s178, 384
      %v238 = vld [vmem:[%s237] sm:$0xff]
      %s239 = scalar_lea.vmem %s200, 192
      %s240 = scalar_lea.vmem %s178, 416
      %v241 = vld [vmem:[%s240] sm:$0xff]
      %s242 = scalar_lea.vmem %s200, 208
      %s243 = scalar_lea.vmem %s178, 448
      %v244 = vld [vmem:[%s243] sm:$0xff]
      %s245 = scalar_lea.vmem %s200, 224
      %s246 = scalar_lea.vmem %s178, 480
      %v247 = vld [vmem:[%s246] sm:$0xff]
      %s248 = scalar_lea.vmem %s200, 240
      %s249 = scalar_lea.vmem %s178, 512
      %v250 = vld [vmem:[%s249] sm:$0xff]
      %s251 = scalar_lea.vmem %s200, 256
      %s252 = scalar_lea.vmem %s178, 544
      %v253 = vld [vmem:[%s252] sm:$0xff]
      %s254 = scalar_lea.vmem %s200, 272
      %s255 = scalar_lea.vmem %s178, 576
      %v256 = vld [vmem:[%s255] sm:$0xff]
      %s257 = scalar_lea.vmem %s200, 288
      %s258 = scalar_lea.vmem %s178, 608
      %v259 = vld [vmem:[%s258] sm:$0xff]
      %s260 = scalar_lea.vmem %s200, 304
      %s261 = scalar_lea.vmem %s178, 640
      %v262 = vld [vmem:[%s261] sm:$0xff]
      %s263 = scalar_lea.vmem %s200, 320
      %s264 = scalar_lea.vmem %s178, 672
      %v265 = vld [vmem:[%s264] sm:$0xff]
      %s266 = scalar_lea.vmem %s200, 336
      %s267 = scalar_lea.vmem %s178, 704
      %v268 = vld [vmem:[%s267] sm:$0xff]
      %s269 = scalar_lea.vmem %s200, 352
      %s270 = scalar_lea.vmem %s178, 736
      %v271 = vld [vmem:[%s270] sm:$0xff]
      %s272 = scalar_lea.vmem %s200, 368
      %s273 = scalar_lea.vmem %s178, 768
      %v274 = vld [vmem:[%s273] sm:$0xff]
      %s275 = scalar_lea.vmem %s200, 384
      %s276 = scalar_lea.vmem %s178, 800
      %v277 = vld [vmem:[%s276] sm:$0xff]
      %s278 = scalar_lea.vmem %s200, 400
      %s279 = scalar_lea.vmem %s178, 832
      %v280 = vld [vmem:[%s279] sm:$0xff]
      %s281 = scalar_lea.vmem %s200, 416
      %s282 = scalar_lea.vmem %s178, 864
      %v283 = vld [vmem:[%s282] sm:$0xff]
      %s284 = scalar_lea.vmem %s200, 432
      %s285 = scalar_lea.vmem %s178, 896
      %v286 = vld [vmem:[%s285] sm:$0xff]
      %s287 = scalar_lea.vmem %s200, 448
      %s288 = scalar_lea.vmem %s178, 928
      %v289 = vld [vmem:[%s288] sm:$0xff]
      %s290 = scalar_lea.vmem %s200, 464
      %s291 = scalar_lea.vmem %s178, 960
      %v292 = vld [vmem:[%s291] sm:$0xff]
      %s293 = scalar_lea.vmem %s200, 480
      %s294 = scalar_lea.vmem %s178, 992
      %v295 = vld [vmem:[%s294] sm:$0xff]
      %s296 = scalar_lea.vmem %s200, 496
      %s297 = scalar_lea.vmem %s178, 8
      %v298 = vld [vmem:[%s297] sm:$0xff]
      %s299 = scalar_lea.vmem %s200, 4
      %s300 = scalar_lea.vmem %s299, 4294967292
      %v301 = vpack.c.bf16 %v298, %v203
      %302 = vst [vmem:[%s300] sm:$0xff] %v301
      %s303 = scalar_lea.vmem %s178, 40
      %v304 = vld [vmem:[%s303] sm:$0xff]
      %s305 = scalar_lea.vmem %s200, 20
      %s306 = scalar_lea.vmem %s305, 4294967292
      %v307 = vpack.c.bf16 %v304, %v205
      %308 = vst [vmem:[%s306] sm:$0xff] %v307
      %s309 = scalar_lea.vmem %s178, 72
      %v310 = vld [vmem:[%s309] sm:$0xff]
      %s311 = scalar_lea.vmem %s200, 36
      %s312 = scalar_lea.vmem %s311, 4294967292
      %v313 = vpack.c.bf16 %v310, %v208
      %314 = vst [vmem:[%s312] sm:$0xff] %v313
      %s315 = scalar_lea.vmem %s178, 104
      %v316 = vld [vmem:[%s315] sm:$0xff]
      %s317 = scalar_lea.vmem %s200, 52
      %s318 = scalar_lea.vmem %s317, 4294967292
      %v319 = vpack.c.bf16 %v316, %v211
      %320 = vst [vmem:[%s318] sm:$0xff] %v319
      %s321 = scalar_lea.vmem %s178, 136
      %v322 = vld [vmem:[%s321] sm:$0xff]
      %s323 = scalar_lea.vmem %s200, 68
      %s324 = scalar_lea.vmem %s323, 4294967292
      %v325 = vpack.c.bf16 %v322, %v214
      %326 = vst [vmem:[%s324] sm:$0xff] %v325
      %s327 = scalar_lea.vmem %s178, 168
      %v328 = vld [vmem:[%s327] sm:$0xff]
      %s329 = scalar_lea.vmem %s200, 84
      %s330 = scalar_lea.vmem %s329, 4294967292
      %v331 = vpack.c.bf16 %v328, %v217
      %332 = vst [vmem:[%s330] sm:$0xff] %v331
      %s333 = scalar_lea.vmem %s178, 200
      %v334 = vld [vmem:[%s333] sm:$0xff]
      %s335 = scalar_lea.vmem %s200, 100
      %s336 = scalar_lea.vmem %s335, 4294967292
      %v337 = vpack.c.bf16 %v334, %v220
      %338 = vst [vmem:[%s336] sm:$0xff] %v337
      %s339 = scalar_lea.vmem %s178, 232
      %v340 = vld [vmem:[%s339] sm:$0xff]
      %s341 = scalar_lea.vmem %s200, 116
      %s342 = scalar_lea.vmem %s341, 4294967292
      %v343 = vpack.c.bf16 %v340, %v223
      %344 = vst [vmem:[%s342] sm:$0xff] %v343
      %s345 = scalar_lea.vmem %s178, 264
      %v346 = vld [vmem:[%s345] sm:$0xff]
      %s347 = scalar_lea.vmem %s200, 132
      %s348 = scalar_lea.vmem %s347, 4294967292
      %v349 = vpack.c.bf16 %v346, %v226
      %350 = vst [vmem:[%s348] sm:$0xff] %v349
      %s351 = scalar_lea.vmem %s178, 296
      %v352 = vld [vmem:[%s351] sm:$0xff]
      %s353 = scalar_lea.vmem %s200, 148
      %s354 = scalar_lea.vmem %s353, 4294967292
      %v355 = vpack.c.bf16 %v352, %v229
      %356 = vst [vmem:[%s354] sm:$0xff] %v355
      %s357 = scalar_lea.vmem %s178, 328
      %v358 = vld [vmem:[%s357] sm:$0xff]
      %s359 = scalar_lea.vmem %s200, 164
      %s360 = scalar_lea.vmem %s359, 4294967292
      %v361 = vpack.c.bf16 %v358, %v232
      %362 = vst [vmem:[%s360] sm:$0xff] %v361
      %s363 = scalar_lea.vmem %s178, 360
      %v364 = vld [vmem:[%s363] sm:$0xff]
      %s365 = scalar_lea.vmem %s200, 180
      %s366 = scalar_lea.vmem %s365, 4294967292
      %v367 = vpack.c.bf16 %v364, %v235
      %368 = vst [vmem:[%s366] sm:$0xff] %v367
      %s369 = scalar_lea.vmem %s178, 392
      %v370 = vld [vmem:[%s369] sm:$0xff]
      %s371 = scalar_lea.vmem %s200, 196
      %s372 = scalar_lea.vmem %s371, 4294967292
      %v373 = vpack.c.bf16 %v370, %v238
      %374 = vst [vmem:[%s372] sm:$0xff] %v373
      %s375 = scalar_lea.vmem %s178, 424
      %v376 = vld [vmem:[%s375] sm:$0xff]
      %s377 = scalar_lea.vmem %s200, 212
      %s378 = scalar_lea.vmem %s377, 4294967292
      %v379 = vpack.c.bf16 %v376, %v241
      %380 = vst [vmem:[%s378] sm:$0xff] %v379
      %s381 = scalar_lea.vmem %s178, 456
      %v382 = vld [vmem:[%s381] sm:$0xff]
      %s383 = scalar_lea.vmem %s200, 228
      %s384 = scalar_lea.vmem %s383, 4294967292
      %v385 = vpack.c.bf16 %v382, %v244
      %386 = vst [vmem:[%s384] sm:$0xff] %v385
      %s387 = scalar_lea.vmem %s178, 488
      %v388 = vld [vmem:[%s387] sm:$0xff]
      %s389 = scalar_lea.vmem %s200, 244
      %s390 = scalar_lea.vmem %s389, 4294967292
      %v391 = vpack.c.bf16 %v388, %v247
      %392 = vst [vmem:[%s390] sm:$0xff] %v391
      %s393 = scalar_lea.vmem %s178, 520
      %v394 = vld [vmem:[%s393] sm:$0xff]
      %s395 = scalar_lea.vmem %s200, 260
      %s396 = scalar_lea.vmem %s395, 4294967292
      %v397 = vpack.c.bf16 %v394, %v250
      %398 = vst [vmem:[%s396] sm:$0xff] %v397
      %s399 = scalar_lea.vmem %s178, 552
      %v400 = vld [vmem:[%s399] sm:$0xff]
      %s401 = scalar_lea.vmem %s200, 276
      %s402 = scalar_lea.vmem %s401, 4294967292
      %v403 = vpack.c.bf16 %v400, %v253
      %404 = vst [vmem:[%s402] sm:$0xff] %v403
      %s405 = scalar_lea.vmem %s178, 584
      %v406 = vld [vmem:[%s405] sm:$0xff]
      %s407 = scalar_lea.vmem %s200, 292
      %s408 = scalar_lea.vmem %s407, 4294967292
      %v409 = vpack.c.bf16 %v406, %v256
      %410 = vst [vmem:[%s408] sm:$0xff] %v409
      %s411 = scalar_lea.vmem %s178, 616
      %v412 = vld [vmem:[%s411] sm:$0xff]
      %s413 = scalar_lea.vmem %s200, 308
      %s414 = scalar_lea.vmem %s413, 4294967292
      %v415 = vpack.c.bf16 %v412, %v259
      %416 = vst [vmem:[%s414] sm:$0xff] %v415
      %s417 = scalar_lea.vmem %s178, 648
      %v418 = vld [vmem:[%s417] sm:$0xff]
      %s419 = scalar_lea.vmem %s200, 324
      %s420 = scalar_lea.vmem %s419, 4294967292
      %v421 = vpack.c.bf16 %v418, %v262
      %422 = vst [vmem:[%s420] sm:$0xff] %v421
      %s423 = scalar_lea.vmem %s178, 680
      %v424 = vld [vmem:[%s423] sm:$0xff]
      %s425 = scalar_lea.vmem %s200, 340
      %s426 = scalar_lea.vmem %s425, 4294967292
      %v427 = vpack.c.bf16 %v424, %v265
      %428 = vst [vmem:[%s426] sm:$0xff] %v427
      %s429 = scalar_lea.vmem %s178, 712
      %v430 = vld [vmem:[%s429] sm:$0xff]
      %s431 = scalar_lea.vmem %s200, 356
      %s432 = scalar_lea.vmem %s431, 4294967292
      %v433 = vpack.c.bf16 %v430, %v268
      %434 = vst [vmem:[%s432] sm:$0xff] %v433
      %s435 = scalar_lea.vmem %s178, 744
      %v436 = vld [vmem:[%s435] sm:$0xff]
      %s437 = scalar_lea.vmem %s200, 372
      %s438 = scalar_lea.vmem %s437, 4294967292
      %v439 = vpack.c.bf16 %v436, %v271
      %440 = vst [vmem:[%s438] sm:$0xff] %v439
      %s441 = scalar_lea.vmem %s178, 776
      %v442 = vld [vmem:[%s441] sm:$0xff]
      %s443 = scalar_lea.vmem %s200, 388
      %s444 = scalar_lea.vmem %s443, 4294967292
      %v445 = vpack.c.bf16 %v442, %v274
      %446 = vst [vmem:[%s444] sm:$0xff] %v445
      %s447 = scalar_lea.vmem %s178, 808
      %v448 = vld [vmem:[%s447] sm:$0xff]
      %s449 = scalar_lea.vmem %s200, 404
      %s450 = scalar_lea.vmem %s449, 4294967292
      %v451 = vpack.c.bf16 %v448, %v277
      %452 = vst [vmem:[%s450] sm:$0xff] %v451
      %s453 = scalar_lea.vmem %s178, 840
      %v454 = vld [vmem:[%s453] sm:$0xff]
      %s455 = scalar_lea.vmem %s200, 420
      %s456 = scalar_lea.vmem %s455, 4294967292
      %v457 = vpack.c.bf16 %v454, %v280
      %458 = vst [vmem:[%s456] sm:$0xff] %v457
      %s459 = scalar_lea.vmem %s178, 872
      %v460 = vld [vmem:[%s459] sm:$0xff]
      %s461 = scalar_lea.vmem %s200, 436
      %s462 = scalar_lea.vmem %s461, 4294967292
      %v463 = vpack.c.bf16 %v460, %v283
      %464 = vst [vmem:[%s462] sm:$0xff] %v463
      %s465 = scalar_lea.vmem %s178, 904
      %v466 = vld [vmem:[%s465] sm:$0xff]
      %s467 = scalar_lea.vmem %s200, 452
      %s468 = scalar_lea.vmem %s467, 4294967292
      %v469 = vpack.c.bf16 %v466, %v286
      %470 = vst [vmem:[%s468] sm:$0xff] %v469
      %s471 = scalar_lea.vmem %s178, 936
      %v472 = vld [vmem:[%s471] sm:$0xff]
      %s473 = scalar_lea.vmem %s200, 468
      %s474 = scalar_lea.vmem %s473, 4294967292
      %v475 = vpack.c.bf16 %v472, %v289
      %476 = vst [vmem:[%s474] sm:$0xff] %v475
      %s477 = scalar_lea.vmem %s178, 968
      %v478 = vld [vmem:[%s477] sm:$0xff]
      %s479 = scalar_lea.vmem %s200, 484
      %s480 = scalar_lea.vmem %s479, 4294967292
      %v481 = vpack.c.bf16 %v478, %v292
      %482 = vst [vmem:[%s480] sm:$0xff] %v481
      %s483 = scalar_lea.vmem %s178, 1000
      %v484 = vld [vmem:[%s483] sm:$0xff]
      %s485 = scalar_lea.vmem %s200, 500
      %s486 = scalar_lea.vmem %s485, 4294967292
      %v487 = vpack.c.bf16 %v484, %v295
      %488 = vst [vmem:[%s486] sm:$0xff] %v487
      %s489 = scalar_lea.vmem %s178, 16
      %v490 = vld [vmem:[%s489] sm:$0xff]
      %s491 = scalar_lea.vmem %s200, 8
      %s492 = scalar_lea.vmem %s178, 48
      %v493 = vld [vmem:[%s492] sm:$0xff]
      %s494 = scalar_lea.vmem %s200, 24
      %s495 = scalar_lea.vmem %s178, 80
      %v496 = vld [vmem:[%s495] sm:$0xff]
      %s497 = scalar_lea.vmem %s200, 40
      %s498 = scalar_lea.vmem %s178, 112
      %v499 = vld [vmem:[%s498] sm:$0xff]
      %s500 = scalar_lea.vmem %s200, 56
      %s501 = scalar_lea.vmem %s178, 144
      %v502 = vld [vmem:[%s501] sm:$0xff]
      %s503 = scalar_lea.vmem %s200, 72
      %s504 = scalar_lea.vmem %s178, 176
      %v505 = vld [vmem:[%s504] sm:$0xff]
      %s506 = scalar_lea.vmem %s200, 88
      %s507 = scalar_lea.vmem %s178, 208
      %v508 = vld [vmem:[%s507] sm:$0xff]
      %s509 = scalar_lea.vmem %s200, 104
      %s510 = scalar_lea.vmem %s178, 240
      %v511 = vld [vmem:[%s510] sm:$0xff]
      %s512 = scalar_lea.vmem %s200, 120
      %s513 = scalar_lea.vmem %s178, 272
      %v514 = vld [vmem:[%s513] sm:$0xff]
      %s515 = scalar_lea.vmem %s200, 136
      %s516 = scalar_lea.vmem %s178, 304
      %v517 = vld [vmem:[%s516] sm:$0xff]
      %s518 = scalar_lea.vmem %s200, 152
      %s519 = scalar_lea.vmem %s178, 336
      %v520 = vld [vmem:[%s519] sm:$0xff]
      %s521 = scalar_lea.vmem %s200, 168
      %s522 = scalar_lea.vmem %s178, 368
      %v523 = vld [vmem:[%s522] sm:$0xff]
      %s524 = scalar_lea.vmem %s200, 184
      %s525 = scalar_lea.vmem %s178, 400
      %v526 = vld [vmem:[%s525] sm:$0xff]
      %s527 = scalar_lea.vmem %s200, 200
      %s528 = scalar_lea.vmem %s178, 432
      %v529 = vld [vmem:[%s528] sm:$0xff]
      %s530 = scalar_lea.vmem %s200, 216
      %s531 = scalar_lea.vmem %s178, 464
      %v532 = vld [vmem:[%s531] sm:$0xff]
      %s533 = scalar_lea.vmem %s200, 232
      %s534 = scalar_lea.vmem %s178, 496
      %v535 = vld [vmem:[%s534] sm:$0xff]
      %s536 = scalar_lea.vmem %s200, 248
      %s537 = scalar_lea.vmem %s178, 528
      %v538 = vld [vmem:[%s537] sm:$0xff]
      %s539 = scalar_lea.vmem %s200, 264
      %s540 = scalar_lea.vmem %s178, 560
      %v541 = vld [vmem:[%s540] sm:$0xff]
      %s542 = scalar_lea.vmem %s200, 280
      %s543 = scalar_lea.vmem %s178, 592
      %v544 = vld [vmem:[%s543] sm:$0xff]
      %s545 = scalar_lea.vmem %s200, 296
      %s546 = scalar_lea.vmem %s178, 624
      %v547 = vld [vmem:[%s546] sm:$0xff]
      %s548 = scalar_lea.vmem %s200, 312
      %s549 = scalar_lea.vmem %s178, 656
      %v550 = vld [vmem:[%s549] sm:$0xff]
      %s551 = scalar_lea.vmem %s200, 328
      %s552 = scalar_lea.vmem %s178, 688
      %v553 = vld [vmem:[%s552] sm:$0xff]
      %s554 = scalar_lea.vmem %s200, 344
      %s555 = scalar_lea.vmem %s178, 720
      %v556 = vld [vmem:[%s555] sm:$0xff]
      %s557 = scalar_lea.vmem %s200, 360
      %s558 = scalar_lea.vmem %s178, 752
      %v559 = vld [vmem:[%s558] sm:$0xff]
      %s560 = scalar_lea.vmem %s200, 376
      %s561 = scalar_lea.vmem %s178, 784
      %v562 = vld [vmem:[%s561] sm:$0xff]
      %s563 = scalar_lea.vmem %s200, 392
      %s564 = scalar_lea.vmem %s178, 816
      %v565 = vld [vmem:[%s564] sm:$0xff]
      %s566 = scalar_lea.vmem %s200, 408
      %s567 = scalar_lea.vmem %s178, 848
      %v568 = vld [vmem:[%s567] sm:$0xff]
      %s569 = scalar_lea.vmem %s200, 424
      %s570 = scalar_lea.vmem %s178, 880
      %v571 = vld [vmem:[%s570] sm:$0xff]
      %s572 = scalar_lea.vmem %s200, 440
      %s573 = scalar_lea.vmem %s178, 912
      %v574 = vld [vmem:[%s573] sm:$0xff]
      %s575 = scalar_lea.vmem %s200, 456
      %s576 = scalar_lea.vmem %s178, 944
      %v577 = vld [vmem:[%s576] sm:$0xff]
      %s578 = scalar_lea.vmem %s200, 472
      %s579 = scalar_lea.vmem %s178, 976
      %v580 = vld [vmem:[%s579] sm:$0xff]
      %s581 = scalar_lea.vmem %s200, 488
      %s582 = scalar_lea.vmem %s178, 1008
      %v583 = vld [vmem:[%s582] sm:$0xff]
      %s584 = scalar_lea.vmem %s200, 504
      %s585 = scalar_lea.vmem %s178, 24
      %v586 = vld [vmem:[%s585] sm:$0xff]
      %s587 = scalar_lea.vmem %s200, 12
      %s588 = scalar_lea.vmem %s587, 4294967292
      %v589 = vpack.c.bf16 %v586, %v490
      %590 = vst [vmem:[%s588] sm:$0xff] %v589
      %s591 = scalar_lea.vmem %s178, 56
      %v592 = vld [vmem:[%s591] sm:$0xff]
      %s593 = scalar_lea.vmem %s200, 28
      %s594 = scalar_lea.vmem %s593, 4294967292
      %v595 = vpack.c.bf16 %v592, %v493
      %596 = vst [vmem:[%s594] sm:$0xff] %v595
      %s597 = scalar_lea.vmem %s178, 88
      %v598 = vld [vmem:[%s597] sm:$0xff]
      %s599 = scalar_lea.vmem %s200, 44
      %s600 = scalar_lea.vmem %s599, 4294967292
      %v601 = vpack.c.bf16 %v598, %v496
      %602 = vst [vmem:[%s600] sm:$0xff] %v601
      %s603 = scalar_lea.vmem %s178, 120
      %v604 = vld [vmem:[%s603] sm:$0xff]
      %s605 = scalar_lea.vmem %s200, 60
      %s606 = scalar_lea.vmem %s605, 4294967292
      %v607 = vpack.c.bf16 %v604, %v499
      %608 = vst [vmem:[%s606] sm:$0xff] %v607
      %s609 = scalar_lea.vmem %s178, 152
      %v610 = vld [vmem:[%s609] sm:$0xff]
      %s611 = scalar_lea.vmem %s200, 76
      %s612 = scalar_lea.vmem %s611, 4294967292
      %v613 = vpack.c.bf16 %v610, %v502
      %614 = vst [vmem:[%s612] sm:$0xff] %v613
      %s615 = scalar_lea.vmem %s178, 184
      %v616 = vld [vmem:[%s615] sm:$0xff]
      %s617 = scalar_lea.vmem %s200, 92
      %s618 = scalar_lea.vmem %s617, 4294967292
      %v619 = vpack.c.bf16 %v616, %v505
      %620 = vst [vmem:[%s618] sm:$0xff] %v619
      %s621 = scalar_lea.vmem %s178, 216
      %v622 = vld [vmem:[%s621] sm:$0xff]
      %s623 = scalar_lea.vmem %s200, 108
      %s624 = scalar_lea.vmem %s623, 4294967292
      %v625 = vpack.c.bf16 %v622, %v508
      %626 = vst [vmem:[%s624] sm:$0xff] %v625
      %s627 = scalar_lea.vmem %s178, 248
      %v628 = vld [vmem:[%s627] sm:$0xff]
      %s629 = scalar_lea.vmem %s200, 124
      %s630 = scalar_lea.vmem %s629, 4294967292
      %v631 = vpack.c.bf16 %v628, %v511
      %632 = vst [vmem:[%s630] sm:$0xff] %v631
      %s633 = scalar_lea.vmem %s178, 280
      %v634 = vld [vmem:[%s633] sm:$0xff]
      %s635 = scalar_lea.vmem %s200, 140
      %s636 = scalar_lea.vmem %s635, 4294967292
      %v637 = vpack.c.bf16 %v634, %v514
      %638 = vst [vmem:[%s636] sm:$0xff] %v637
      %s639 = scalar_lea.vmem %s178, 312
      %v640 = vld [vmem:[%s639] sm:$0xff]
      %s641 = scalar_lea.vmem %s200, 156
      %s642 = scalar_lea.vmem %s641, 4294967292
      %v643 = vpack.c.bf16 %v640, %v517
      %644 = vst [vmem:[%s642] sm:$0xff] %v643
      %s645 = scalar_lea.vmem %s178, 344
      %v646 = vld [vmem:[%s645] sm:$0xff]
      %s647 = scalar_lea.vmem %s200, 172
      %s648 = scalar_lea.vmem %s647, 4294967292
      %v649 = vpack.c.bf16 %v646, %v520
      %650 = vst [vmem:[%s648] sm:$0xff] %v649
      %s651 = scalar_lea.vmem %s178, 376
      %v652 = vld [vmem:[%s651] sm:$0xff]
      %s653 = scalar_lea.vmem %s200, 188
      %s654 = scalar_lea.vmem %s653, 4294967292
      %v655 = vpack.c.bf16 %v652, %v523
      %656 = vst [vmem:[%s654] sm:$0xff] %v655
      %s657 = scalar_lea.vmem %s178, 408
      %v658 = vld [vmem:[%s657] sm:$0xff]
      %s659 = scalar_lea.vmem %s200, 204
      %s660 = scalar_lea.vmem %s659, 4294967292
      %v661 = vpack.c.bf16 %v658, %v526
      %662 = vst [vmem:[%s660] sm:$0xff] %v661
      %s663 = scalar_lea.vmem %s178, 440
      %v664 = vld [vmem:[%s663] sm:$0xff]
      %s665 = scalar_lea.vmem %s200, 220
      %s666 = scalar_lea.vmem %s665, 4294967292
      %v667 = vpack.c.bf16 %v664, %v529
      %668 = vst [vmem:[%s666] sm:$0xff] %v667
      %s669 = scalar_lea.vmem %s178, 472
      %v670 = vld [vmem:[%s669] sm:$0xff]
      %s671 = scalar_lea.vmem %s200, 236
      %s672 = scalar_lea.vmem %s671, 4294967292
      %v673 = vpack.c.bf16 %v670, %v532
      %674 = vst [vmem:[%s672] sm:$0xff] %v673
      %s675 = scalar_lea.vmem %s178, 504
      %v676 = vld [vmem:[%s675] sm:$0xff]
      %s677 = scalar_lea.vmem %s200, 252
      %s678 = scalar_lea.vmem %s677, 4294967292
      %v679 = vpack.c.bf16 %v676, %v535
      %680 = vst [vmem:[%s678] sm:$0xff] %v679
      %s681 = scalar_lea.vmem %s178, 536
      %v682 = vld [vmem:[%s681] sm:$0xff]
      %s683 = scalar_lea.vmem %s200, 268
      %s684 = scalar_lea.vmem %s683, 4294967292
      %v685 = vpack.c.bf16 %v682, %v538
      %686 = vst [vmem:[%s684] sm:$0xff] %v685
      %s687 = scalar_lea.vmem %s178, 568
      %v688 = vld [vmem:[%s687] sm:$0xff]
      %s689 = scalar_lea.vmem %s200, 284
      %s690 = scalar_lea.vmem %s689, 4294967292
      %v691 = vpack.c.bf16 %v688, %v541
      %692 = vst [vmem:[%s690] sm:$0xff] %v691
      %s693 = scalar_lea.vmem %s178, 600
      %v694 = vld [vmem:[%s693] sm:$0xff]
      %s695 = scalar_lea.vmem %s200, 300
      %s696 = scalar_lea.vmem %s695, 4294967292
      %v697 = vpack.c.bf16 %v694, %v544
      %698 = vst [vmem:[%s696] sm:$0xff] %v697
      %s699 = scalar_lea.vmem %s178, 632
      %v700 = vld [vmem:[%s699] sm:$0xff]
      %s701 = scalar_lea.vmem %s200, 316
      %s702 = scalar_lea.vmem %s701, 4294967292
      %v703 = vpack.c.bf16 %v700, %v547
      %704 = vst [vmem:[%s702] sm:$0xff] %v703
      %s705 = scalar_lea.vmem %s178, 664
      %v706 = vld [vmem:[%s705] sm:$0xff]
      %s707 = scalar_lea.vmem %s200, 332
      %s708 = scalar_lea.vmem %s707, 4294967292
      %v709 = vpack.c.bf16 %v706, %v550
      %710 = vst [vmem:[%s708] sm:$0xff] %v709
      %s711 = scalar_lea.vmem %s178, 696
      %v712 = vld [vmem:[%s711] sm:$0xff]
      %s713 = scalar_lea.vmem %s200, 348
      %s714 = scalar_lea.vmem %s713, 4294967292
      %v715 = vpack.c.bf16 %v712, %v553
      %716 = vst [vmem:[%s714] sm:$0xff] %v715
      %s717 = scalar_lea.vmem %s178, 728
      %v718 = vld [vmem:[%s717] sm:$0xff]
      %s719 = scalar_lea.vmem %s200, 364
      %s720 = scalar_lea.vmem %s719, 4294967292
      %v721 = vpack.c.bf16 %v718, %v556
      %722 = vst [vmem:[%s720] sm:$0xff] %v721
      %s723 = scalar_lea.vmem %s178, 760
      %v724 = vld [vmem:[%s723] sm:$0xff]
      %s725 = scalar_lea.vmem %s200, 380
      %s726 = scalar_lea.vmem %s725, 4294967292
      %v727 = vpack.c.bf16 %v724, %v559
      %728 = vst [vmem:[%s726] sm:$0xff] %v727
      %s729 = scalar_lea.vmem %s178, 792
      %v730 = vld [vmem:[%s729] sm:$0xff]
      %s731 = scalar_lea.vmem %s200, 396
      %s732 = scalar_lea.vmem %s731, 4294967292
      %v733 = vpack.c.bf16 %v730, %v562
      %734 = vst [vmem:[%s732] sm:$0xff] %v733
      %s735 = scalar_lea.vmem %s178, 824
      %v736 = vld [vmem:[%s735] sm:$0xff]
      %s737 = scalar_lea.vmem %s200, 412
      %s738 = scalar_lea.vmem %s737, 4294967292
      %v739 = vpack.c.bf16 %v736, %v565
      %740 = vst [vmem:[%s738] sm:$0xff] %v739
      %s741 = scalar_lea.vmem %s178, 856
      %v742 = vld [vmem:[%s741] sm:$0xff]
      %s743 = scalar_lea.vmem %s200, 428
      %s744 = scalar_lea.vmem %s743, 4294967292
      %v745 = vpack.c.bf16 %v742, %v568
      %746 = vst [vmem:[%s744] sm:$0xff] %v745
      %s747 = scalar_lea.vmem %s178, 888
      %v748 = vld [vmem:[%s747] sm:$0xff]
      %s749 = scalar_lea.vmem %s200, 444
      %s750 = scalar_lea.vmem %s749, 4294967292
      %v751 = vpack.c.bf16 %v748, %v571
      %752 = vst [vmem:[%s750] sm:$0xff] %v751
      %s753 = scalar_lea.vmem %s178, 920
      %v754 = vld [vmem:[%s753] sm:$0xff]
      %s755 = scalar_lea.vmem %s200, 460
      %s756 = scalar_lea.vmem %s755, 4294967292
      %v757 = vpack.c.bf16 %v754, %v574
      %758 = vst [vmem:[%s756] sm:$0xff] %v757
      %s759 = scalar_lea.vmem %s178, 952
      %v760 = vld [vmem:[%s759] sm:$0xff]
      %s761 = scalar_lea.vmem %s200, 476
      %s762 = scalar_lea.vmem %s761, 4294967292
      %v763 = vpack.c.bf16 %v760, %v577
      %764 = vst [vmem:[%s762] sm:$0xff] %v763
      %s765 = scalar_lea.vmem %s178, 984
      %v766 = vld [vmem:[%s765] sm:$0xff]
      %s767 = scalar_lea.vmem %s200, 492
      %s768 = scalar_lea.vmem %s767, 4294967292
      %v769 = vpack.c.bf16 %v766, %v580
      %770 = vst [vmem:[%s768] sm:$0xff] %v769
      %s771 = scalar_lea.vmem %s178, 1016
      %v772 = vld [vmem:[%s771] sm:$0xff]
      %s773 = scalar_lea.vmem %s200, 508
      %s774 = scalar_lea.vmem %s773, 4294967292
      %v775 = vpack.c.bf16 %v772, %v583
      %776 = vst [vmem:[%s774] sm:$0xff] %v775
      %s777 = smul.u32 32, %s40
      %s778 = smul.u32 4, %s41
      %p779 = scmp.lt.s32.totalorder %s38, 2
      %s780 = scalar_select %p779, %s38, 2
      %p781 = scmp.lt.s32.totalorder %s39, 2
      %s782 = scalar_select %p781, %s39, 2
      %p783 = scmp.lt.s32.totalorder %s777, 63
      %s784 = scalar_select %p783, %s777, 63
      %p785 = scmp.lt.s32.totalorder %s778, 3
      %s786 = scalar_select %p785, %s778, 3
      %s787 = smul.addr %s784, 4
      %s788 = sadd.s32 %s786, %s787
      %s789 = smul.addr %s782, 256
      %s790 = sadd.s32 %s788, %s789
      %s791 = smul.addr %s780, 768
      %s792 = sadd.s32 %s790, %s791
      %s793 = smul.addr %s792, 4
      %s794 = scalar_lea.vmem %s1, %s793
      %s795 = smul.u32 32, %s40
      %s796 = smul.u32 4, %s41
    $region20: #{reverse} parent=5 // pred_fallthru
      _
    %p797 = scmp.le.s32.totalorder 10, %s3
    // Predicated region
    $region21: #{reverse} parent=5 // pred_check
      %p798 = pneg %p797
    $region22: #{reverse} parent=5 // pred_check_branch
      %800 = sbr.rel (%p798) target = $region24
    $region23: #{reverse} parent=5 // pred_region
      %s801 = ssub.s32 %s3, 10
      %s802 = smul.u32 32, %s60
      %s803 = smul.u32 4, %s61
      %p804 = scmp.lt.s32.totalorder %s58, 2
      %s805 = scalar_select %p804, %s58, 2
      %p806 = scmp.lt.s32.totalorder %s59, 2
      %s807 = scalar_select %p806, %s59, 2
      %p808 = scmp.lt.s32.totalorder %s802, 63
      %s809 = scalar_select %p808, %s802, 63
      %p810 = scmp.lt.s32.totalorder %s803, 3
      %s811 = scalar_select %p810, %s803, 3
      %s812 = smul.addr %s809, 4
      %s813 = sadd.s32 %s811, %s812
      %s814 = smul.addr %s807, 256
      %s815 = sadd.s32 %s813, %s814
      %s816 = smul.addr %s805, 768
      %s817 = sadd.s32 %s815, %s816
      %s818 = smul.addr %s817, 4
      %s819 = scalar_lea.vmem %s1, %s818
    $region24: #{reverse} parent=5 // pred_fallthru
      _
  $region6: #{reverse} parent=0 // loop_footer
    %s7 = sadd.s32 1, %s3
  $region7: #{reverse} parent=0 // loop_footer_branch
    %2 = sbr.rel target = $region3
  $region8: #{reverse} parent=0 // loop_exit
    _

// kernel: embedding_net_l2.1
$region0: #{embedding_net_l2.1}
  #allocation0 [shape = 'u32[]', space=smem, size = 0x4, offset = 0x4, fixed_abs, tag = 'smem constant byte address 0x4 - core index']
  #allocation1 [shape = 'u32[72,128]{1,0:T(1,128)}', space=vmem, size = 0x9000, scoped, tag = 'internal scratch']
  #allocation2 [shape = 'f32[8,512]{1,0:T(8,128)}', space=vmem, size = 0x4000, scoped, tag = 'scratch operand']
  %s0 = inlined_call_operand.vmem [shape: bf16[8,8,512], index: 0, kind: input, shape index: {}]
  %s1 = inlined_call_operand.vmem [shape: f32[512,256], index: 1, kind: input, shape index: {}]
  %s2 = inlined_call_operand.vmem [shape: f32[1,256], index: 2, kind: input, shape index: {}]
  %s3 = inlined_call_operand.vmem [shape: f32[256,256], index: 3, kind: input, shape index: {}]
  %s4 = inlined_call_operand.vmem [shape: f32[1,256], index: 4, kind: input, shape index: {}]
  %s5 = inlined_call_operand.vmem [shape: f32[256,128], index: 5, kind: input, shape index: {}]
  %s6 = inlined_call_operand.vmem [shape: f32[1,128], index: 6, kind: input, shape index: {}]
  %s7 = inlined_call_operand.vmem [shape: f32[1,256], index: 7, kind: input, shape index: {}]
  %s8 = inlined_call_operand.vmem [shape: f32[1,256], index: 8, kind: input, shape index: {}]
  %s9 = inlined_call_operand.vmem [shape: f32[8,128], index: 9, kind: output, shape index: {}]
  %s10 = sld [smem:[#allocation0]]
  $region54: #{embedding_net_l2.1} parent=0
    _
  %s12 = ssub.s32 1, %s10
  %s13 = scalar_select 0, %s12, %s10
  // Predicated region
  $region2: #{embedding_net_l2.1} parent=0 // pred_check
    _
  $region3: #{embedding_net_l2.1} parent=0 // pred_check_branch
    %15 = sbr.rel (0) target = $region5
  $region4: #{embedding_net_l2.1} parent=0 // pred_region
    _
  $region5: #{embedding_net_l2.1} parent=0 // pred_fallthru
    _
  // Predicated region
  $region6: #{embedding_net_l2.1} parent=0 // pred_check
    _
  $region7: #{embedding_net_l2.1} parent=0 // pred_check_branch
    %17 = sbr.rel (0) target = $region9
  $region8: #{embedding_net_l2.1} parent=0 // pred_region
    _
  $region9: #{embedding_net_l2.1} parent=0 // pred_fallthru
    _
  // Predicated region
  $region10: #{embedding_net_l2.1} parent=0 // pred_check
    _
  $region11: #{embedding_net_l2.1} parent=0 // pred_check_branch
    %19 = sbr.rel (0) target = $region13
  $region12: #{embedding_net_l2.1} parent=0 // pred_region
    _
  $region13: #{embedding_net_l2.1} parent=0 // pred_fallthru
    _
  // Predicated region
  $region14: #{embedding_net_l2.1} parent=0 // pred_check
    _
  $region15: #{embedding_net_l2.1} parent=0 // pred_check_branch
    %21 = sbr.rel (0) target = $region17
  $region16: #{embedding_net_l2.1} parent=0 // pred_region
    _
  $region17: #{embedding_net_l2.1} parent=0 // pred_fallthru
    _
  // Predicated region
  $region18: #{embedding_net_l2.1} parent=0 // pred_check
    _
  $region19: #{embedding_net_l2.1} parent=0 // pred_check_branch
    %23 = sbr.rel (0) target = $region21
  $region20: #{embedding_net_l2.1} parent=0 // pred_region
    _
  $region21: #{embedding_net_l2.1} parent=0 // pred_fallthru
    _
  // Predicated region
  $region22: #{embedding_net_l2.1} parent=0 // pred_check
    _
  $region23: #{embedding_net_l2.1} parent=0 // pred_check_branch
    %25 = sbr.rel (0) target = $region25
  $region24: #{embedding_net_l2.1} parent=0 // pred_region
    _
  $region25: #{embedding_net_l2.1} parent=0 // pred_fallthru
    _
  // Predicated region
  $region26: #{embedding_net_l2.1} parent=0 // pred_check
    _
  $region27: #{embedding_net_l2.1} parent=0 // pred_check_branch
    %27 = sbr.rel (0) target = $region29
  $region28: #{embedding_net_l2.1} parent=0 // pred_region
    _
  $region29: #{embedding_net_l2.1} parent=0 // pred_fallthru
    _
  // Predicated region
  $region30: #{embedding_net_l2.1} parent=0 // pred_check
    _
  $region31: #{embedding_net_l2.1} parent=0 // pred_check_branch
    %29 = sbr.rel (0) target = $region33
  $region32: #{embedding_net_l2.1} parent=0 // pred_region
    _
  $region33: #{embedding_net_l2.1} parent=0 // pred_fallthru
    _
  // Predicated region
  $region34: #{embedding_net_l2.1} parent=0 // pred_check
    _
  $region35: #{embedding_net_l2.1} parent=0 // pred_check_branch
    %31 = sbr.rel (0) target = $region37
  $region36: #{embedding_net_l2.1} parent=0 // pred_region
    _
  $region37: #{embedding_net_l2.1} parent=0 // pred_fallthru
    _
  %p32 = scmp.eq.s32.totalorder 0, 0
  // Predicated region
  $region38: #{embedding_net_l2.1} parent=0 // pred_check
    %p33 = pneg %p32
  $region39: #{embedding_net_l2.1} parent=0 // pred_check_branch
    %35 = sbr.rel (%p33) target = $region41
  $region40: #{embedding_net_l2.1} parent=0 // pred_region
    %36 = vst [vmem:[#allocation2] sm:$0xff] 0.0
    %37 = vst [vmem:[#allocation2 + $0x8] sm:$0xff] 0.0
    %38 = vst [vmem:[#allocation2 + $0x10] sm:$0xff] 0.0
    %39 = vst [vmem:[#allocation2 + $0x18] sm:$0xff] 0.0
  $region41: #{embedding_net_l2.1} parent=0 // pred_fallthru
    _
  %v40 = vld [vmem:[#allocation2] sm:$0xff]
  %v41 = vld [vmem:[#allocation2 + $0x8] sm:$0xff]
  %v42 = vld [vmem:[#allocation2 + $0x10] sm:$0xff]
  %v43 = vld [vmem:[#allocation2 + $0x18] sm:$0xff]
  %v44 = vld [vmem:[%s0] sm:$0xff]
  %v45 = vld [vmem:[%s0 + $0x8] sm:$0xff]
  %v46 = vld [vmem:[%s0 + $0x10] sm:$0xff]
  %v47 = vld [vmem:[%s0 + $0x18] sm:$0xff]
  %v48 = vld [vmem:[%s0 + $0x20] sm:$0xff]
  %v49 = vld [vmem:[%s0 + $0x28] sm:$0xff]
  %v50 = vld [vmem:[%s0 + $0x30] sm:$0xff]
  %v51 = vld [vmem:[%s0 + $0x38] sm:$0xff]
  %v52 = vld [vmem:[%s0 + $0x40] sm:$0xff]
  %v53 = vld [vmem:[%s0 + $0x48] sm:$0xff]
  %v54 = vld [vmem:[%s0 + $0x50] sm:$0xff]
  %v55 = vld [vmem:[%s0 + $0x58] sm:$0xff]
  %v56 = vld [vmem:[%s0 + $0x60] sm:$0xff]
  %v57 = vld [vmem:[%s0 + $0x68] sm:$0xff]
  %v58 = vld [vmem:[%s0 + $0x70] sm:$0xff]
  %v59 = vld [vmem:[%s0 + $0x78] sm:$0xff]
  %v60 = vunpack.c.l.bf16 %v44
  %v61 = vunpack.c.h.bf16 %v44
  %v62 = vunpack.c.l.bf16 %v45
  %v63 = vunpack.c.h.bf16 %v45
  %v64 = vunpack.c.l.bf16 %v46
  %v65 = vunpack.c.h.bf16 %v46
  %v66 = vunpack.c.l.bf16 %v47
  %v67 = vunpack.c.h.bf16 %v47
  %v68 = vunpack.c.l.bf16 %v48
  %v69 = vunpack.c.h.bf16 %v48
  %v70 = vunpack.c.l.bf16 %v49
  %v71 = vunpack.c.h.bf16 %v49
  %v72 = vunpack.c.l.bf16 %v50
  %v73 = vunpack.c.h.bf16 %v50
  %v74 = vunpack.c.l.bf16 %v51
  %v75 = vunpack.c.h.bf16 %v51
  %v76 = vunpack.c.l.bf16 %v52
  %v77 = vunpack.c.h.bf16 %v52
  %v78 = vunpack.c.l.bf16 %v53
  %v79 = vunpack.c.h.bf16 %v53
  %v80 = vunpack.c.l.bf16 %v54
  %v81 = vunpack.c.h.bf16 %v54
  %v82 = vunpack.c.l.bf16 %v55
  %v83 = vunpack.c.h.bf16 %v55
  %v84 = vunpack.c.l.bf16 %v56
  %v85 = vunpack.c.h.bf16 %v56
  %v86 = vunpack.c.l.bf16 %v57
  %v87 = vunpack.c.h.bf16 %v57
  %v88 = vunpack.c.l.bf16 %v58
  %v89 = vunpack.c.h.bf16 %v58
  %v90 = vunpack.c.l.bf16 %v59
  %v91 = vunpack.c.h.bf16 %v59
  %v92 = vrot.slane %v60, 4
  %v93 = vadd.f32 %v60, %v92
  %v94 = vrot.slane %v93, 2
  %v95 = vadd.f32 %v93, %v94
  %v96 = vrot.slane %v95, 1
  %v97 = vadd.f32 %v95, %v96
  %v98 = vrot.slane %v61, 4
  %v99 = vadd.f32 %v61, %v98
  %v100 = vrot.slane %v99, 2
  %v101 = vadd.f32 %v99, %v100
  %v102 = vrot.slane %v101, 1
  %v103 = vadd.f32 %v101, %v102
  %v104 = vrot.slane %v62, 4
  %v105 = vadd.f32 %v62, %v104
  %v106 = vrot.slane %v105, 2
  %v107 = vadd.f32 %v105, %v106
  %v108 = vrot.slane %v107, 1
  %v109 = vadd.f32 %v107, %v108
  %v110 = vrot.slane %v63, 4
  %v111 = vadd.f32 %v63, %v110
  %v112 = vrot.slane %v111, 2
  %v113 = vadd.f32 %v111, %v112
  %v114 = vrot.slane %v113, 1
  %v115 = vadd.f32 %v113, %v114
  %v116 = vrot.slane %v64, 4
  %v117 = vadd.f32 %v64, %v116
  %v118 = vrot.slane %v117, 2
  %v119 = vadd.f32 %v117, %v118
  %v120 = vrot.slane %v119, 1
  %v121 = vadd.f32 %v119, %v120
  %v122 = vrot.slane %v65, 4
  %v123 = vadd.f32 %v65, %v122
  %v124 = vrot.slane %v123, 2
  %v125 = vadd.f32 %v123, %v124
  %v126 = vrot.slane %v125, 1
  %v127 = vadd.f32 %v125, %v126
  %v128 = vrot.slane %v66, 4
  %v129 = vadd.f32 %v66, %v128
  %v130 = vrot.slane %v129, 2
  %v131 = vadd.f32 %v129, %v130
  %v132 = vrot.slane %v131, 1
  %v133 = vadd.f32 %v131, %v132
  %v134 = vrot.slane %v67, 4
  %v135 = vadd.f32 %v67, %v134
  %v136 = vrot.slane %v135, 2
  %v137 = vadd.f32 %v135, %v136
  %v138 = vrot.slane %v137, 1
  %v139 = vadd.f32 %v137, %v138
  %v140 = vrot.slane %v68, 4
  %v141 = vadd.f32 %v68, %v140
  %v142 = vrot.slane %v141, 2
  %v143 = vadd.f32 %v141, %v142
  %v144 = vrot.slane %v143, 1
  %v145 = vadd.f32 %v143, %v144
  %v146 = vrot.slane %v69, 4
  %v147 = vadd.f32 %v69, %v146
  %v148 = vrot.slane %v147, 2
  %v149 = vadd.f32 %v147, %v148
  %v150 = vrot.slane %v149, 1
  %v151 = vadd.f32 %v149, %v150
  %v152 = vrot.slane %v70, 4
  %v153 = vadd.f32 %v70, %v152
  %v154 = vrot.slane %v153, 2
  %v155 = vadd.f32 %v153, %v154
  %v156 = vrot.slane %v155, 1
  %v157 = vadd.f32 %v155, %v156
  %v158 = vrot.slane %v71, 4
  %v159 = vadd.f32 %v71, %v158
  %v160 = vrot.slane %v159, 2
  %v161 = vadd.f32 %v159, %v160
  %v162 = vrot.slane %v161, 1
  %v163 = vadd.f32 %v161, %v162
  %v164 = vrot.slane %v72, 4
  %v165 = vadd.f32 %v72, %v164
  %v166 = vrot.slane %v165, 2
  %v167 = vadd.f32 %v165, %v166
  %v168 = vrot.slane %v167, 1
  %v169 = vadd.f32 %v167, %v168
  %v170 = vrot.slane %v73, 4
  %v171 = vadd.f32 %v73, %v170
  %v172 = vrot.slane %v171, 2
  %v173 = vadd.f32 %v171, %v172
  %v174 = vrot.slane %v173, 1
  %v175 = vadd.f32 %v173, %v174
  %v176 = vrot.slane %v74, 4
  %v177 = vadd.f32 %v74, %v176
  %v178 = vrot.slane %v177, 2
  %v179 = vadd.f32 %v177, %v178
  %v180 = vrot.slane %v179, 1
  %v181 = vadd.f32 %v179, %v180
  %v182 = vrot.slane %v75, 4
  %v183 = vadd.f32 %v75, %v182
  %v184 = vrot.slane %v183, 2
  %v185 = vadd.f32 %v183, %v184
  %v186 = vrot.slane %v185, 1
  %v187 = vadd.f32 %v185, %v186
  %v188 = vrot.slane %v76, 4
  %v189 = vadd.f32 %v76, %v188
  %v190 = vrot.slane %v189, 2
  %v191 = vadd.f32 %v189, %v190
  %v192 = vrot.slane %v191, 1
  %v193 = vadd.f32 %v191, %v192
  %v194 = vrot.slane %v77, 4
  %v195 = vadd.f32 %v77, %v194
  %v196 = vrot.slane %v195, 2
  %v197 = vadd.f32 %v195, %v196
  %v198 = vrot.slane %v197, 1
  %v199 = vadd.f32 %v197, %v198
  %v200 = vrot.slane %v78, 4
  %v201 = vadd.f32 %v78, %v200
  %v202 = vrot.slane %v201, 2
  %v203 = vadd.f32 %v201, %v202
  %v204 = vrot.slane %v203, 1
  %v205 = vadd.f32 %v203, %v204
  %v206 = vrot.slane %v79, 4
  %v207 = vadd.f32 %v79, %v206
  %v208 = vrot.slane %v207, 2
  %v209 = vadd.f32 %v207, %v208
  %v210 = vrot.slane %v209, 1
  %v211 = vadd.f32 %v209, %v210
  %v212 = vrot.slane %v80, 4
  %v213 = vadd.f32 %v80, %v212
  %v214 = vrot.slane %v213, 2
  %v215 = vadd.f32 %v213, %v214
  %v216 = vrot.slane %v215, 1
  %v217 = vadd.f32 %v215, %v216
  %v218 = vrot.slane %v81, 4
  %v219 = vadd.f32 %v81, %v218
  %v220 = vrot.slane %v219, 2
  %v221 = vadd.f32 %v219, %v220
  %v222 = vrot.slane %v221, 1
  %v223 = vadd.f32 %v221, %v222
  %v224 = vrot.slane %v82, 4
  %v225 = vadd.f32 %v82, %v224
  %v226 = vrot.slane %v225, 2
  %v227 = vadd.f32 %v225, %v226
  %v228 = vrot.slane %v227, 1
  %v229 = vadd.f32 %v227, %v228
  %v230 = vrot.slane %v83, 4
  %v231 = vadd.f32 %v83, %v230
  %v232 = vrot.slane %v231, 2
  %v233 = vadd.f32 %v231, %v232
  %v234 = vrot.slane %v233, 1
  %v235 = vadd.f32 %v233, %v234
  %v236 = vrot.slane %v84, 4
  %v237 = vadd.f32 %v84, %v236
  %v238 = vrot.slane %v237, 2
  %v239 = vadd.f32 %v237, %v238
  %v240 = vrot.slane %v239, 1
  %v241 = vadd.f32 %v239, %v240
  %v242 = vrot.slane %v85, 4
  %v243 = vadd.f32 %v85, %v242
  %v244 = vrot.slane %v243, 2
  %v245 = vadd.f32 %v243, %v244
  %v246 = vrot.slane %v245, 1
  %v247 = vadd.f32 %v245, %v246
  %v248 = vrot.slane %v86, 4
  %v249 = vadd.f32 %v86, %v248
  %v250 = vrot.slane %v249, 2
  %v251 = vadd.f32 %v249, %v250
  %v252 = vrot.slane %v251, 1
  %v253 = vadd.f32 %v251, %v252
  %v254 = vrot.slane %v87, 4
  %v255 = vadd.f32 %v87, %v254
  %v256 = vrot.slane %v255, 2
  %v257 = vadd.f32 %v255, %v256
  %v258 = vrot.slane %v257, 1
  %v259 = vadd.f32 %v257, %v258
  %v260 = vrot.slane %v88, 4
  %v261 = vadd.f32 %v88, %v260
  %v262 = vrot.slane %v261, 2
  %v263 = vadd.f32 %v261, %v262
  %v264 = vrot.slane %v263, 1
  %v265 = vadd.f32 %v263, %v264
  %v266 = vrot.slane %v89, 4
  %v267 = vadd.f32 %v89, %v266
  %v268 = vrot.slane %v267, 2
  %v269 = vadd.f32 %v267, %v268
  %v270 = vrot.slane %v269, 1
  %v271 = vadd.f32 %v269, %v270
  %v272 = vrot.slane %v90, 4
  %v273 = vadd.f32 %v90, %v272
  %v274 = vrot.slane %v273, 2
  %v275 = vadd.f32 %v273, %v274
  %v276 = vrot.slane %v275, 1
  %v277 = vadd.f32 %v275, %v276
  %v278 = vrot.slane %v91, 4
  %v279 = vadd.f32 %v91, %v278
  %v280 = vrot.slane %v279, 2
  %v281 = vadd.f32 %v279, %v280
  %v282 = vrot.slane %v281, 1
  %v283 = vadd.f32 %v281, %v282
  %vm316 = vcmask 1041409
  %v317 = vsel %vm316, %v121, %v97
  %vm318 = vcmask 1042434
  %v319 = vsel %vm318, %v145, %v317
  %vm320 = vcmask 1043459
  %v321 = vsel %vm320, %v169, %v319
  %vm322 = vcmask 1044484
  %v323 = vsel %vm322, %v193, %v321
  %vm324 = vcmask 1045509
  %v325 = vsel %vm324, %v217, %v323
  %vm326 = vcmask 1046534
  %v327 = vsel %vm326, %v241, %v325
  %vm328 = vcmask 1047559
  %v329 = vsel %vm328, %v265, %v327
  %v330 = vsel %vm316, %v127, %v103
  %v331 = vsel %vm318, %v151, %v330
  %v332 = vsel %vm320, %v175, %v331
  %v333 = vsel %vm322, %v199, %v332
  %v334 = vsel %vm324, %v223, %v333
  %v335 = vsel %vm326, %v247, %v334
  %v336 = vsel %vm328, %v271, %v335
  %v337 = vsel %vm316, %v133, %v109
  %v338 = vsel %vm318, %v157, %v337
  %v339 = vsel %vm320, %v181, %v338
  %v340 = vsel %vm322, %v205, %v339
  %v341 = vsel %vm324, %v229, %v340
  %v342 = vsel %vm326, %v253, %v341
  %v343 = vsel %vm328, %v277, %v342
  %v344 = vsel %vm316, %v139, %v115
  %v345 = vsel %vm318, %v163, %v344
  %v346 = vsel %vm320, %v187, %v345
  %v347 = vsel %vm322, %v211, %v346
  %v348 = vsel %vm324, %v235, %v347
  %v349 = vsel %vm326, %v259, %v348
  %v350 = vsel %vm328, %v283, %v349
  %v355 = vadd.f32 %v40, %v329
  %v356 = vadd.f32 %v41, %v336
  %v357 = vadd.f32 %v42, %v343
  %v358 = vadd.f32 %v43, %v350
  %359 = vst [vmem:[#allocation2] sm:$0xff] %v355
  %360 = vst [vmem:[#allocation2 + $0x8] sm:$0xff] %v356
  %361 = vst [vmem:[#allocation2 + $0x10] sm:$0xff] %v357
  %362 = vst [vmem:[#allocation2 + $0x18] sm:$0xff] %v358
  // Predicated region
  $region42: #{embedding_net_l2.1} parent=0 // pred_check
    %p363 = pneg %p32
  $region43: #{embedding_net_l2.1} parent=0 // pred_check_branch
    %365 = sbr.rel (%p363) target = $region45
  $region44: #{embedding_net_l2.1} parent=0 // pred_region
    %v366 = vld [vmem:[#allocation2] sm:$0xff]
    %v367 = vld [vmem:[#allocation2 + $0x8] sm:$0xff]
    %v368 = vld [vmem:[#allocation2 + $0x10] sm:$0xff]
    %v369 = vld [vmem:[#allocation2 + $0x18] sm:$0xff]
    %v370 = vld [vmem:[%s1] sm:$0xff]
    %v371 = vld [vmem:[%s1 + $0x8] sm:$0xff]
    %v372 = vld [vmem:[%s1 + $0x10] sm:$0xff]
    %v373 = vld [vmem:[%s1 + $0x18] sm:$0xff]
    %v374 = vld [vmem:[%s1 + $0x20] sm:$0xff]
    %v375 = vld [vmem:[%s1 + $0x28] sm:$0xff]
    %v376 = vld [vmem:[%s1 + $0x30] sm:$0xff]
    %v377 = vld [vmem:[%s1 + $0x38] sm:$0xff]
    %v378 = vld [vmem:[%s1 + $0x40] sm:$0xff]
    %v379 = vld [vmem:[%s1 + $0x48] sm:$0xff]
    %v380 = vld [vmem:[%s1 + $0x50] sm:$0xff]
    %v381 = vld [vmem:[%s1 + $0x58] sm:$0xff]
    %v382 = vld [vmem:[%s1 + $0x60] sm:$0xff]
    %v383 = vld [vmem:[%s1 + $0x68] sm:$0xff]
    %v384 = vld [vmem:[%s1 + $0x70] sm:$0xff]
    %v385 = vld [vmem:[%s1 + $0x78] sm:$0xff]
    %v386 = vld [vmem:[%s1 + $0x80] sm:$0xff]
    %v387 = vld [vmem:[%s1 + $0x88] sm:$0xff]
    %v388 = vld [vmem:[%s1 + $0x90] sm:$0xff]
    %v389 = vld [vmem:[%s1 + $0x98] sm:$0xff]
    %v390 = vld [vmem:[%s1 + $0xa0] sm:$0xff]
    %v391 = vld [vmem:[%s1 + $0xa8] sm:$0xff]
    %v392 = vld [vmem:[%s1 + $0xb0] sm:$0xff]
    %v393 = vld [vmem:[%s1 + $0xb8] sm:$0xff]
    %v394 = vld [vmem:[%s1 + $0xc0] sm:$0xff]
    %v395 = vld [vmem:[%s1 + $0xc8] sm:$0xff]
    %v396 = vld [vmem:[%s1 + $0xd0] sm:$0xff]
    %v397 = vld [vmem:[%s1 + $0xd8] sm:$0xff]
    %v398 = vld [vmem:[%s1 + $0xe0] sm:$0xff]
    %v399 = vld [vmem:[%s1 + $0xe8] sm:$0xff]
    %v400 = vld [vmem:[%s1 + $0xf0] sm:$0xff]
    %v401 = vld [vmem:[%s1 + $0xf8] sm:$0xff]
    %v402 = vld [vmem:[%s1 + $0x100] sm:$0xff]
    %v403 = vld [vmem:[%s1 + $0x108] sm:$0xff]
    %v404 = vld [vmem:[%s1 + $0x110] sm:$0xff]
    %v405 = vld [vmem:[%s1 + $0x118] sm:$0xff]
    %v406 = vld [vmem:[%s1 + $0x120] sm:$0xff]
    %v407 = vld [vmem:[%s1 + $0x128] sm:$0xff]
    %v408 = vld [vmem:[%s1 + $0x130] sm:$0xff]
    %v409 = vld [vmem:[%s1 + $0x138] sm:$0xff]
    %v410 = vld [vmem:[%s1 + $0x140] sm:$0xff]
    %v411 = vld [vmem:[%s1 + $0x148] sm:$0xff]
    %v412 = vld [vmem:[%s1 + $0x150] sm:$0xff]
    %v413 = vld [vmem:[%s1 + $0x158] sm:$0xff]
    %v414 = vld [vmem:[%s1 + $0x160] sm:$0xff]
    %v415 = vld [vmem:[%s1 + $0x168] sm:$0xff]
    %v416 = vld [vmem:[%s1 + $0x170] sm:$0xff]
    %v417 = vld [vmem:[%s1 + $0x178] sm:$0xff]
    %v418 = vld [vmem:[%s1 + $0x180] sm:$0xff]
    %v419 = vld [vmem:[%s1 + $0x188] sm:$0xff]
    %v420 = vld [vmem:[%s1 + $0x190] sm:$0xff]
    %v421 = vld [vmem:[%s1 + $0x198] sm:$0xff]
    %v422 = vld [vmem:[%s1 + $0x1a0] sm:$0xff]
    %v423 = vld [vmem:[%s1 + $0x1a8] sm:$0xff]
    %v424 = vld [vmem:[%s1 + $0x1b0] sm:$0xff]
    %v425 = vld [vmem:[%s1 + $0x1b8] sm:$0xff]
    %v426 = vld [vmem:[%s1 + $0x1c0] sm:$0xff]
    %v427 = vld [vmem:[%s1 + $0x1c8] sm:$0xff]
    %v428 = vld [vmem:[%s1 + $0x1d0] sm:$0xff]
    %v429 = vld [vmem:[%s1 + $0x1d8] sm:$0xff]
    %v430 = vld [vmem:[%s1 + $0x1e0] sm:$0xff]
    %v431 = vld [vmem:[%s1 + $0x1e8] sm:$0xff]
    %v432 = vld [vmem:[%s1 + $0x1f0] sm:$0xff]
    %v433 = vld [vmem:[%s1 + $0x1f8] sm:$0xff]
    %v434 = vld [vmem:[%s1 + $0x200] sm:$0xff]
    %v435 = vld [vmem:[%s1 + $0x208] sm:$0xff]
    %v436 = vld [vmem:[%s1 + $0x210] sm:$0xff]
    %v437 = vld [vmem:[%s1 + $0x218] sm:$0xff]
    %v438 = vld [vmem:[%s1 + $0x220] sm:$0xff]
    %v439 = vld [vmem:[%s1 + $0x228] sm:$0xff]
    %v440 = vld [vmem:[%s1 + $0x230] sm:$0xff]
    %v441 = vld [vmem:[%s1 + $0x238] sm:$0xff]
    %v442 = vld [vmem:[%s1 + $0x240] sm:$0xff]
    %v443 = vld [vmem:[%s1 + $0x248] sm:$0xff]
    %v444 = vld [vmem:[%s1 + $0x250] sm:$0xff]
    %v445 = vld [vmem:[%s1 + $0x258] sm:$0xff]
    %v446 = vld [vmem:[%s1 + $0x260] sm:$0xff]
    %v447 = vld [vmem:[%s1 + $0x268] sm:$0xff]
    %v448 = vld [vmem:[%s1 + $0x270] sm:$0xff]
    %v449 = vld [vmem:[%s1 + $0x278] sm:$0xff]
    %v450 = vld [vmem:[%s1 + $0x280] sm:$0xff]
    %v451 = vld [vmem:[%s1 + $0x288] sm:$0xff]
    %v452 = vld [vmem:[%s1 + $0x290] sm:$0xff]
    %v453 = vld [vmem:[%s1 + $0x298] sm:$0xff]
    %v454 = vld [vmem:[%s1 + $0x2a0] sm:$0xff]
    %v455 = vld [vmem:[%s1 + $0x2a8] sm:$0xff]
    %v456 = vld [vmem:[%s1 + $0x2b0] sm:$0xff]
    %v457 = vld [vmem:[%s1 + $0x2b8] sm:$0xff]
    %v458 = vld [vmem:[%s1 + $0x2c0] sm:$0xff]
    %v459 = vld [vmem:[%s1 + $0x2c8] sm:$0xff]
    %v460 = vld [vmem:[%s1 + $0x2d0] sm:$0xff]
    %v461 = vld [vmem:[%s1 + $0x2d8] sm:$0xff]
    %v462 = vld [vmem:[%s1 + $0x2e0] sm:$0xff]
    %v463 = vld [vmem:[%s1 + $0x2e8] sm:$0xff]
    %v464 = vld [vmem:[%s1 + $0x2f0] sm:$0xff]
    %v465 = vld [vmem:[%s1 + $0x2f8] sm:$0xff]
    %v466 = vld [vmem:[%s1 + $0x300] sm:$0xff]
    %v467 = vld [vmem:[%s1 + $0x308] sm:$0xff]
    %v468 = vld [vmem:[%s1 + $0x310] sm:$0xff]
    %v469 = vld [vmem:[%s1 + $0x318] sm:$0xff]
    %v470 = vld [vmem:[%s1 + $0x320] sm:$0xff]
    %v471 = vld [vmem:[%s1 + $0x328] sm:$0xff]
    %v472 = vld [vmem:[%s1 + $0x330] sm:$0xff]
    %v473 = vld [vmem:[%s1 + $0x338] sm:$0xff]
    %v474 = vld [vmem:[%s1 + $0x340] sm:$0xff]
    %v475 = vld [vmem:[%s1 + $0x348] sm:$0xff]
    %v476 = vld [vmem:[%s1 + $0x350] sm:$0xff]
    %v477 = vld [vmem:[%s1 + $0x358] sm:$0xff]
    %v478 = vld [vmem:[%s1 + $0x360] sm:$0xff]
    %v479 = vld [vmem:[%s1 + $0x368] sm:$0xff]
    %v480 = vld [vmem:[%s1 + $0x370] sm:$0xff]
    %v481 = vld [vmem:[%s1 + $0x378] sm:$0xff]
    %v482 = vld [vmem:[%s1 + $0x380] sm:$0xff]
    %v483 = vld [vmem:[%s1 + $0x388] sm:$0xff]
    %v484 = vld [vmem:[%s1 + $0x390] sm:$0xff]
    %v485 = vld [vmem:[%s1 + $0x398] sm:$0xff]
    %v486 = vld [vmem:[%s1 + $0x3a0] sm:$0xff]
    %v487 = vld [vmem:[%s1 + $0x3a8] sm:$0xff]
    %v488 = vld [vmem:[%s1 + $0x3b0] sm:$0xff]
    %v489 = vld [vmem:[%s1 + $0x3b8] sm:$0xff]
    %v490 = vld [vmem:[%s1 + $0x3c0] sm:$0xff]
    %v491 = vld [vmem:[%s1 + $0x3c8] sm:$0xff]
    %v492 = vld [vmem:[%s1 + $0x3d0] sm:$0xff]
    %v493 = vld [vmem:[%s1 + $0x3d8] sm:$0xff]
    %v494 = vld [vmem:[%s1 + $0x3e0] sm:$0xff]
    %v495 = vld [vmem:[%s1 + $0x3e8] sm:$0xff]
    %v496 = vld [vmem:[%s1 + $0x3f0] sm:$0xff]
    %v497 = vld [vmem:[%s1 + $0x3f8] sm:$0xff]
    %v498 = vld [vmem:[%s2] sm:$0x3]
    %v500 = vperm.slane %v498, 0
    %v501 = vperm.slane %v498, 1
    %504 = vmatpush.msra.mxu0 %v400
    %505 = vmatpush.msra.mxu0 %v398
    %506 = vmatpush.msra.mxu0 %v396
    %507 = vmatpush.msra.mxu0 %v394
    %508 = vmatpush.msra.mxu0 %v392
    %509 = vmatpush.msra.mxu0 %v390
    %510 = vmatpush.msra.mxu0 %v388
    %511 = vmatpush.msra.mxu0 %v386
    %512 = vmatpush.msra.mxu0 %v384
    %513 = vmatpush.msra.mxu0 %v382
    %514 = vmatpush.msra.mxu0 %v380
    %515 = vmatpush.msra.mxu0 %v378
    %516 = vmatpush.msra.mxu0 %v376
    %517 = vmatpush.msra.mxu0 %v374
    %518 = vmatpush.msra.mxu0 %v372
    %519 = vmatpush.msra.mxu0 %v370
    %520 = vmatmul.f32.gmra.mxu0 %v366
    %v521 = vpop.f32.mrf.mxu0
    %v522 = vadd.f32 %v500, %v521
    %523 = vdwg.mxu0
    %524 = vmatpush.msra.mxu0 %v432
    %525 = vmatpush.msra.mxu0 %v430
    %526 = vmatpush.msra.mxu0 %v428
    %527 = vmatpush.msra.mxu0 %v426
    %528 = vmatpush.msra.mxu0 %v424
    %529 = vmatpush.msra.mxu0 %v422
    %530 = vmatpush.msra.mxu0 %v420
    %531 = vmatpush.msra.mxu0 %v418
    %532 = vmatpush.msra.mxu0 %v416
    %533 = vmatpush.msra.mxu0 %v414
    %534 = vmatpush.msra.mxu0 %v412
    %535 = vmatpush.msra.mxu0 %v410
    %536 = vmatpush.msra.mxu0 %v408
    %537 = vmatpush.msra.mxu0 %v406
    %538 = vmatpush.msra.mxu0 %v404
    %539 = vmatpush.msra.mxu0 %v402
    %540 = vmatmul.f32.gmra.mxu0 %v367
    %v541 = vpop.f32.mrf.mxu0
    %v542 = vadd.f32 %v522, %v541
    %543 = vdwg.mxu0
    %544 = vmatpush.msra.mxu0 %v464
    %545 = vmatpush.msra.mxu0 %v462
    %546 = vmatpush.msra.mxu0 %v460
    %547 = vmatpush.msra.mxu0 %v458
    %548 = vmatpush.msra.mxu0 %v456
    %549 = vmatpush.msra.mxu0 %v454
    %550 = vmatpush.msra.mxu0 %v452
    %551 = vmatpush.msra.mxu0 %v450
    %552 = vmatpush.msra.mxu0 %v448
    %553 = vmatpush.msra.mxu0 %v446
    %554 = vmatpush.msra.mxu0 %v444
    %555 = vmatpush.msra.mxu0 %v442
    %556 = vmatpush.msra.mxu0 %v440
    %557 = vmatpush.msra.mxu0 %v438
    %558 = vmatpush.msra.mxu0 %v436
    %559 = vmatpush.msra.mxu0 %v434
    %560 = vmatmul.f32.gmra.mxu0 %v368
    %v561 = vpop.f32.mrf.mxu0
    %v562 = vadd.f32 %v542, %v561
    %563 = vdwg.mxu0
    %564 = vmatpush.msra.mxu0 %v496
    %565 = vmatpush.msra.mxu0 %v494
    %566 = vmatpush.msra.mxu0 %v492
    %567 = vmatpush.msra.mxu0 %v490
    %568 = vmatpush.msra.mxu0 %v488
    %569 = vmatpush.msra.mxu0 %v486
    %570 = vmatpush.msra.mxu0 %v484
    %571 = vmatpush.msra.mxu0 %v482
    %572 = vmatpush.msra.mxu0 %v480
    %573 = vmatpush.msra.mxu0 %v478
    %574 = vmatpush.msra.mxu0 %v476
    %575 = vmatpush.msra.mxu0 %v474
    %576 = vmatpush.msra.mxu0 %v472
    %577 = vmatpush.msra.mxu0 %v470
    %578 = vmatpush.msra.mxu0 %v468
    %579 = vmatpush.msra.mxu0 %v466
    %580 = vmatmul.f32.gmra.mxu0 %v369
    %v581 = vpop.f32.mrf.mxu0
    %v582 = vadd.f32 %v562, %v581
    %583 = vdwg.mxu0
    %584 = vmatpush.msra.mxu0 %v401
    %585 = vmatpush.msra.mxu0 %v399
    %586 = vmatpush.msra.mxu0 %v397
    %587 = vmatpush.msra.mxu0 %v395
    %588 = vmatpush.msra.mxu0 %v393
    %589 = vmatpush.msra.mxu0 %v391
    %590 = vmatpush.msra.mxu0 %v389
    %591 = vmatpush.msra.mxu0 %v387
    %592 = vmatpush.msra.mxu0 %v385
    %593 = vmatpush.msra.mxu0 %v383
    %594 = vmatpush.msra.mxu0 %v381
    %595 = vmatpush.msra.mxu0 %v379
    %596 = vmatpush.msra.mxu0 %v377
    %597 = vmatpush.msra.mxu0 %v375
    %598 = vmatpush.msra.mxu0 %v373
    %599 = vmatpush.msra.mxu0 %v371
    %600 = vmatmul.f32.gmra.mxu0 %v366
    %v601 = vpop.f32.mrf.mxu0
    %v602 = vadd.f32 %v501, %v601
    %603 = vdwg.mxu0
    %604 = vmatpush.msra.mxu0 %v433
    %605 = vmatpush.msra.mxu0 %v431
    %606 = vmatpush.msra.mxu0 %v429
    %607 = vmatpush.msra.mxu0 %v427
    %608 = vmatpush.msra.mxu0 %v425
    %609 = vmatpush.msra.mxu0 %v423
    %610 = vmatpush.msra.mxu0 %v421
    %611 = vmatpush.msra.mxu0 %v419
    %612 = vmatpush.msra.mxu0 %v417
    %613 = vmatpush.msra.mxu0 %v415
    %614 = vmatpush.msra.mxu0 %v413
    %615 = vmatpush.msra.mxu0 %v411
    %616 = vmatpush.msra.mxu0 %v409
    %617 = vmatpush.msra.mxu0 %v407
    %618 = vmatpush.msra.mxu0 %v405
    %619 = vmatpush.msra.mxu0 %v403
    %620 = vmatmul.f32.gmra.mxu0 %v367
    %v621 = vpop.f32.mrf.mxu0
    %v622 = vadd.f32 %v602, %v621
    %623 = vdwg.mxu0
    %624 = vmatpush.msra.mxu0 %v465
    %625 = vmatpush.msra.mxu0 %v463
    %626 = vmatpush.msra.mxu0 %v461
    %627 = vmatpush.msra.mxu0 %v459
    %628 = vmatpush.msra.mxu0 %v457
    %629 = vmatpush.msra.mxu0 %v455
    %630 = vmatpush.msra.mxu0 %v453
    %631 = vmatpush.msra.mxu0 %v451
    %632 = vmatpush.msra.mxu0 %v449
    %633 = vmatpush.msra.mxu0 %v447
    %634 = vmatpush.msra.mxu0 %v445
    %635 = vmatpush.msra.mxu0 %v443
    %636 = vmatpush.msra.mxu0 %v441
    %637 = vmatpush.msra.mxu0 %v439
    %638 = vmatpush.msra.mxu0 %v437
    %639 = vmatpush.msra.mxu0 %v435
    %640 = vmatmul.f32.gmra.mxu0 %v368
    %v641 = vpop.f32.mrf.mxu0
    %v642 = vadd.f32 %v622, %v641
    %643 = vdwg.mxu0
    %644 = vmatpush.msra.mxu0 %v497
    %645 = vmatpush.msra.mxu0 %v495
    %646 = vmatpush.msra.mxu0 %v493
    %647 = vmatpush.msra.mxu0 %v491
    %648 = vmatpush.msra.mxu0 %v489
    %649 = vmatpush.msra.mxu0 %v487
    %650 = vmatpush.msra.mxu0 %v485
    %651 = vmatpush.msra.mxu0 %v483
    %652 = vmatpush.msra.mxu0 %v481
    %653 = vmatpush.msra.mxu0 %v479
    %654 = vmatpush.msra.mxu0 %v477
    %655 = vmatpush.msra.mxu0 %v475
    %656 = vmatpush.msra.mxu0 %v473
    %657 = vmatpush.msra.mxu0 %v471
    %658 = vmatpush.msra.mxu0 %v469
    %659 = vmatpush.msra.mxu0 %v467
    %660 = vmatmul.f32.gmra.mxu0 %v369
    %v661 = vpop.f32.mrf.mxu0
    %v662 = vadd.f32 %v642, %v661
    %663 = vdwg.mxu0
    %vm664 = vcmp.ge.f32.partialorder %v582, 0.0
    %vm665 = vcmp.ge.f32.partialorder %v662, 0.0
    %v666 = vld [vmem:[%s7] sm:$0x3]
    %v668 = vperm.slane %v666, 0
    %v669 = vperm.slane %v666, 1
    %v672 = vmul.f32 %v668, %v582
    %v673 = vmul.f32 %v669, %v662
    %v674 = vsel %vm664, %v582, %v672
    %v675 = vsel %vm665, %v662, %v673
    %v676 = vld [vmem:[%s3] sm:$0xff]
    %v677 = vld [vmem:[%s3 + $0x8] sm:$0xff]
    %v678 = vld [vmem:[%s3 + $0x10] sm:$0xff]
    %v679 = vld [vmem:[%s3 + $0x18] sm:$0xff]
    %v680 = vld [vmem:[%s3 + $0x20] sm:$0xff]
    %v681 = vld [vmem:[%s3 + $0x28] sm:$0xff]
    %v682 = vld [vmem:[%s3 + $0x30] sm:$0xff]
    %v683 = vld [vmem:[%s3 + $0x38] sm:$0xff]
    %v684 = vld [vmem:[%s3 + $0x40] sm:$0xff]
    %v685 = vld [vmem:[%s3 + $0x48] sm:$0xff]
    %v686 = vld [vmem:[%s3 + $0x50] sm:$0xff]
    %v687 = vld [vmem:[%s3 + $0x58] sm:$0xff]
    %v688 = vld [vmem:[%s3 + $0x60] sm:$0xff]
    %v689 = vld [vmem:[%s3 + $0x68] sm:$0xff]
    %v690 = vld [vmem:[%s3 + $0x70] sm:$0xff]
    %v691 = vld [vmem:[%s3 + $0x78] sm:$0xff]
    %v692 = vld [vmem:[%s3 + $0x80] sm:$0xff]
    %v693 = vld [vmem:[%s3 + $0x88] sm:$0xff]
    %v694 = vld [vmem:[%s3 + $0x90] sm:$0xff]
    %v695 = vld [vmem:[%s3 + $0x98] sm:$0xff]
    %v696 = vld [vmem:[%s3 + $0xa0] sm:$0xff]
    %v697 = vld [vmem:[%s3 + $0xa8] sm:$0xff]
    %v698 = vld [vmem:[%s3 + $0xb0] sm:$0xff]
    %v699 = vld [vmem:[%s3 + $0xb8] sm:$0xff]
    %v700 = vld [vmem:[%s3 + $0xc0] sm:$0xff]
    %v701 = vld [vmem:[%s3 + $0xc8] sm:$0xff]
    %v702 = vld [vmem:[%s3 + $0xd0] sm:$0xff]
    %v703 = vld [vmem:[%s3 + $0xd8] sm:$0xff]
    %v704 = vld [vmem:[%s3 + $0xe0] sm:$0xff]
    %v705 = vld [vmem:[%s3 + $0xe8] sm:$0xff]
    %v706 = vld [vmem:[%s3 + $0xf0] sm:$0xff]
    %v707 = vld [vmem:[%s3 + $0xf8] sm:$0xff]
    %v708 = vld [vmem:[%s3 + $0x100] sm:$0xff]
    %v709 = vld [vmem:[%s3 + $0x108] sm:$0xff]
    %v710 = vld [vmem:[%s3 + $0x110] sm:$0xff]
    %v711 = vld [vmem:[%s3 + $0x118] sm:$0xff]
    %v712 = vld [vmem:[%s3 + $0x120] sm:$0xff]
    %v713 = vld [vmem:[%s3 + $0x128] sm:$0xff]
    %v714 = vld [vmem:[%s3 + $0x130] sm:$0xff]
    %v715 = vld [vmem:[%s3 + $0x138] sm:$0xff]
    %v716 = vld [vmem:[%s3 + $0x140] sm:$0xff]
    %v717 = vld [vmem:[%s3 + $0x148] sm:$0xff]
    %v718 = vld [vmem:[%s3 + $0x150] sm:$0xff]
    %v719 = vld [vmem:[%s3 + $0x158] sm:$0xff]
    %v720 = vld [vmem:[%s3 + $0x160] sm:$0xff]
    %v721 = vld [vmem:[%s3 + $0x168] sm:$0xff]
    %v722 = vld [vmem:[%s3 + $0x170] sm:$0xff]
    %v723 = vld [vmem:[%s3 + $0x178] sm:$0xff]
    %v724 = vld [vmem:[%s3 + $0x180] sm:$0xff]
    %v725 = vld [vmem:[%s3 + $0x188] sm:$0xff]
    %v726 = vld [vmem:[%s3 + $0x190] sm:$0xff]
    %v727 = vld [vmem:[%s3 + $0x198] sm:$0xff]
    %v728 = vld [vmem:[%s3 + $0x1a0] sm:$0xff]
    %v729 = vld [vmem:[%s3 + $0x1a8] sm:$0xff]
    %v730 = vld [vmem:[%s3 + $0x1b0] sm:$0xff]
    %v731 = vld [vmem:[%s3 + $0x1b8] sm:$0xff]
    %v732 = vld [vmem:[%s3 + $0x1c0] sm:$0xff]
    %v733 = vld [vmem:[%s3 + $0x1c8] sm:$0xff]
    %v734 = vld [vmem:[%s3 + $0x1d0] sm:$0xff]
    %v735 = vld [vmem:[%s3 + $0x1d8] sm:$0xff]
    %v736 = vld [vmem:[%s3 + $0x1e0] sm:$0xff]
    %v737 = vld [vmem:[%s3 + $0x1e8] sm:$0xff]
    %v738 = vld [vmem:[%s3 + $0x1f0] sm:$0xff]
    %v739 = vld [vmem:[%s3 + $0x1f8] sm:$0xff]
    %v740 = vld [vmem:[%s4] sm:$0x3]
    %v742 = vperm.slane %v740, 0
    %v743 = vperm.slane %v740, 1
    %746 = vmatpush.msra.mxu0 %v706
    %747 = vmatpush.msra.mxu0 %v704
    %748 = vmatpush.msra.mxu0 %v702
    %749 = vmatpush.msra.mxu0 %v700
    %750 = vmatpush.msra.mxu0 %v698
    %751 = vmatpush.msra.mxu0 %v696
    %752 = vmatpush.msra.mxu0 %v694
    %753 = vmatpush.msra.mxu0 %v692
    %754 = vmatpush.msra.mxu0 %v690
    %755 = vmatpush.msra.mxu0 %v688
    %756 = vmatpush.msra.mxu0 %v686
    %757 = vmatpush.msra.mxu0 %v684
    %758 = vmatpush.msra.mxu0 %v682
    %759 = vmatpush.msra.mxu0 %v680
    %760 = vmatpush.msra.mxu0 %v678
    %761 = vmatpush.msra.mxu0 %v676
    %762 = vmatmul.f32.gmra.mxu0 %v674
    %v763 = vpop.f32.mrf.mxu0
    %v764 = vadd.f32 %v742, %v763
    %765 = vdwg.mxu0
    %766 = vmatpush.msra.mxu0 %v738
    %767 = vmatpush.msra.mxu0 %v736
    %768 = vmatpush.msra.mxu0 %v734
    %769 = vmatpush.msra.mxu0 %v732
    %770 = vmatpush.msra.mxu0 %v730
    %771 = vmatpush.msra.mxu0 %v728
    %772 = vmatpush.msra.mxu0 %v726
    %773 = vmatpush.msra.mxu0 %v724
    %774 = vmatpush.msra.mxu0 %v722
    %775 = vmatpush.msra.mxu0 %v720
    %776 = vmatpush.msra.mxu0 %v718
    %777 = vmatpush.msra.mxu0 %v716
    %778 = vmatpush.msra.mxu0 %v714
    %779 = vmatpush.msra.mxu0 %v712
    %780 = vmatpush.msra.mxu0 %v710
    %781 = vmatpush.msra.mxu0 %v708
    %782 = vmatmul.f32.gmra.mxu0 %v675
    %v783 = vpop.f32.mrf.mxu0
    %v784 = vadd.f32 %v764, %v783
    %785 = vdwg.mxu0
    %786 = vmatpush.msra.mxu0 %v707
    %787 = vmatpush.msra.mxu0 %v705
    %788 = vmatpush.msra.mxu0 %v703
    %789 = vmatpush.msra.mxu0 %v701
    %790 = vmatpush.msra.mxu0 %v699
    %791 = vmatpush.msra.mxu0 %v697
    %792 = vmatpush.msra.mxu0 %v695
    %793 = vmatpush.msra.mxu0 %v693
    %794 = vmatpush.msra.mxu0 %v691
    %795 = vmatpush.msra.mxu0 %v689
    %796 = vmatpush.msra.mxu0 %v687
    %797 = vmatpush.msra.mxu0 %v685
    %798 = vmatpush.msra.mxu0 %v683
    %799 = vmatpush.msra.mxu0 %v681
    %800 = vmatpush.msra.mxu0 %v679
    %801 = vmatpush.msra.mxu0 %v677
    %802 = vmatmul.f32.gmra.mxu0 %v674
    %v803 = vpop.f32.mrf.mxu0
    %v804 = vadd.f32 %v743, %v803
    %805 = vdwg.mxu0
    %806 = vmatpush.msra.mxu0 %v739
    %807 = vmatpush.msra.mxu0 %v737
    %808 = vmatpush.msra.mxu0 %v735
    %809 = vmatpush.msra.mxu0 %v733
    %810 = vmatpush.msra.mxu0 %v731
    %811 = vmatpush.msra.mxu0 %v729
    %812 = vmatpush.msra.mxu0 %v727
    %813 = vmatpush.msra.mxu0 %v725
    %814 = vmatpush.msra.mxu0 %v723
    %815 = vmatpush.msra.mxu0 %v721
    %816 = vmatpush.msra.mxu0 %v719
    %817 = vmatpush.msra.mxu0 %v717
    %818 = vmatpush.msra.mxu0 %v715
    %819 = vmatpush.msra.mxu0 %v713
    %820 = vmatpush.msra.mxu0 %v711
    %821 = vmatpush.msra.mxu0 %v709
    %822 = vmatmul.f32.gmra.mxu0 %v675
    %v823 = vpop.f32.mrf.mxu0
    %v824 = vadd.f32 %v804, %v823
    %825 = vdwg.mxu0
    %vm826 = vcmp.ge.f32.partialorder %v784, 0.0
    %vm827 = vcmp.ge.f32.partialorder %v824, 0.0
    %v828 = vld [vmem:[%s8] sm:$0x3]
    %v830 = vperm.slane %v828, 0
    %v831 = vperm.slane %v828, 1
    %v834 = vmul.f32 %v830, %v784
    %v835 = vmul.f32 %v831, %v824
    %v836 = vsel %vm826, %v784, %v834
    %v837 = vsel %vm827, %v824, %v835
    %v838 = vld [vmem:[%s5] sm:$0xff]
    %v839 = vld [vmem:[%s5 + $0x8] sm:$0xff]
    %v840 = vld [vmem:[%s5 + $0x10] sm:$0xff]
    %v841 = vld [vmem:[%s5 + $0x18] sm:$0xff]
    %v842 = vld [vmem:[%s5 + $0x20] sm:$0xff]
    %v843 = vld [vmem:[%s5 + $0x28] sm:$0xff]
    %v844 = vld [vmem:[%s5 + $0x30] sm:$0xff]
    %v845 = vld [vmem:[%s5 + $0x38] sm:$0xff]
    %v846 = vld [vmem:[%s5 + $0x40] sm:$0xff]
    %v847 = vld [vmem:[%s5 + $0x48] sm:$0xff]
    %v848 = vld [vmem:[%s5 + $0x50] sm:$0xff]
    %v849 = vld [vmem:[%s5 + $0x58] sm:$0xff]
    %v850 = vld [vmem:[%s5 + $0x60] sm:$0xff]
    %v851 = vld [vmem:[%s5 + $0x68] sm:$0xff]
    %v852 = vld [vmem:[%s5 + $0x70] sm:$0xff]
    %v853 = vld [vmem:[%s5 + $0x78] sm:$0xff]
    %v854 = vld [vmem:[%s5 + $0x80] sm:$0xff]
    %v855 = vld [vmem:[%s5 + $0x88] sm:$0xff]
    %v856 = vld [vmem:[%s5 + $0x90] sm:$0xff]
    %v857 = vld [vmem:[%s5 + $0x98] sm:$0xff]
    %v858 = vld [vmem:[%s5 + $0xa0] sm:$0xff]
    %v859 = vld [vmem:[%s5 + $0xa8] sm:$0xff]
    %v860 = vld [vmem:[%s5 + $0xb0] sm:$0xff]
    %v861 = vld [vmem:[%s5 + $0xb8] sm:$0xff]
    %v862 = vld [vmem:[%s5 + $0xc0] sm:$0xff]
    %v863 = vld [vmem:[%s5 + $0xc8] sm:$0xff]
    %v864 = vld [vmem:[%s5 + $0xd0] sm:$0xff]
    %v865 = vld [vmem:[%s5 + $0xd8] sm:$0xff]
    %v866 = vld [vmem:[%s5 + $0xe0] sm:$0xff]
    %v867 = vld [vmem:[%s5 + $0xe8] sm:$0xff]
    %v868 = vld [vmem:[%s5 + $0xf0] sm:$0xff]
    %v869 = vld [vmem:[%s5 + $0xf8] sm:$0xff]
    %v870 = vld [vmem:[%s6] sm:$0x1]
    %v872 = vperm.slane %v870, 0
    %874 = vmatpush.msra.mxu0 %v853
    %875 = vmatpush.msra.mxu0 %v852
    %876 = vmatpush.msra.mxu0 %v851
    %877 = vmatpush.msra.mxu0 %v850
    %878 = vmatpush.msra.mxu0 %v849
    %879 = vmatpush.msra.mxu0 %v848
    %880 = vmatpush.msra.mxu0 %v847
    %881 = vmatpush.msra.mxu0 %v846
    %882 = vmatpush.msra.mxu0 %v845
    %883 = vmatpush.msra.mxu0 %v844
    %884 = vmatpush.msra.mxu0 %v843
    %885 = vmatpush.msra.mxu0 %v842
    %886 = vmatpush.msra.mxu0 %v841
    %887 = vmatpush.msra.mxu0 %v840
    %888 = vmatpush.msra.mxu0 %v839
    %889 = vmatpush.msra.mxu0 %v838
    %890 = vmatmul.f32.gmra.mxu0 %v836
    %v891 = vpop.f32.mrf.mxu0
    %v892 = vadd.f32 %v872, %v891
    %893 = vdwg.mxu0
    %894 = vmatpush.msra.mxu0 %v869
    %895 = vmatpush.msra.mxu0 %v868
    %896 = vmatpush.msra.mxu0 %v867
    %897 = vmatpush.msra.mxu0 %v866
    %898 = vmatpush.msra.mxu0 %v865
    %899 = vmatpush.msra.mxu0 %v864
    %900 = vmatpush.msra.mxu0 %v863
    %901 = vmatpush.msra.mxu0 %v862
    %902 = vmatpush.msra.mxu0 %v861
    %903 = vmatpush.msra.mxu0 %v860
    %904 = vmatpush.msra.mxu0 %v859
    %905 = vmatpush.msra.mxu0 %v858
    %906 = vmatpush.msra.mxu0 %v857
    %907 = vmatpush.msra.mxu0 %v856
    %908 = vmatpush.msra.mxu0 %v855
    %909 = vmatpush.msra.mxu0 %v854
    %910 = vmatmul.f32.gmra.mxu0 %v837
    %v911 = vpop.f32.mrf.mxu0
    %v912 = vadd.f32 %v892, %v911
    %913 = vdwg.mxu0
    %v914 = vmul.f32 %v912, %v912
    %915 = vadd.xlane.f32.xlu0 %v914
    %v916 = vpop.xlane.xlu0 %915
    %v917 = vadd.f32 %v916, 1e-12
    %v918 = vrsqrt.pop %v917
    %v919 = vmul.f32 %v918, %v917
    %v920 = vmul.f32 %v919, %v918
    %v921 = vmul.f32 0.5, %v920
    %v922 = vsub.f32 1.5, %v921
    %v923 = vmul.f32 %v918, %v922
    %vm924 = vweird.f32 %v917
    %vm925 = vweird.f32 %v918
    %vm926 = vmor %vm924, %vm925
    %v927 = vsel %vm926, %v918, %v923
    %v928 = vmul.f32 %v912, %v927
    %929 = vst [vmem:[%s9] sm:$0xff] %v928
  $region45: #{embedding_net_l2.1} parent=0 // pred_fallthru
    _
  // Predicated region
  $region46: #{embedding_net_l2.1} parent=0 // pred_check
    _
  $region47: #{embedding_net_l2.1} parent=0 // pred_check_branch
    %931 = sbr.rel (0) target = $region49
  $region48: #{embedding_net_l2.1} parent=0 // pred_region
    _
  $region49: #{embedding_net_l2.1} parent=0 // pred_fallthru
    _
  // Predicated region
  $region50: #{embedding_net_l2.1} parent=0 // pred_check
    _
  $region51: #{embedding_net_l2.1} parent=0 // pred_check_branch
    %933 = sbr.rel (0) target = $region53
  $region52: #{embedding_net_l2.1} parent=0 // pred_region
    _
  $region53: #{embedding_net_l2.1} parent=0 // pred_fallthru
    _

</llo_original>
